<compile_context>
chip_gen: v6e
topology: v6e:2x2x1
jax: 0.10.0
libtpu: 0.0.40
codegen_flags: <defaults>
</compile_context>

<pallas_src>
import functools

import numpy as np

import jax
import jax.numpy as jnp
from jax import lax
from jax.experimental import pallas as pl
from jax.experimental.pallas import tpu as pltpu

ALPHA = 0.25
GAMMA = 2.0
BETA = 1.0 / 9.0
LANES = 128
SUB = 8            # sub-chunk rows: keeps the IoU-loop carry at ~8 vregs


def _pow(x, g):
    if float(g) == 2.0:      # exact squaring for the default gamma
        return x * x
    return jnp.power(x, g)


# --------------------------- fused per-tile kernel ----------------------------
def _fused_focal_kernel(boxes_ref, labels_ref, nbox_ref,      # SMEM GT tables
                        afeat_ref, cls_ref, reg_ref,          # VMEM blocks
                        out_ref,                               # resident accum
                        *, max_m, alpha, gamma, beta):
    i = pl.program_id(0)          # image               (parallel)
    t = pl.program_id(2)          # anchor tile          (reduction, last)

    @pl.when(t == 0)
    def _init():
        out_ref[...] = jnp.zeros_like(out_ref)

    nb = nbox_ref[i]
    tile_rows = afeat_ref.shape[1]
    n_sub = tile_rows // SUB

    half_over_beta = 0.5 / beta
    half_beta = 0.5 * beta

    cls_acc = jnp.zeros((SUB, LANES), jnp.float32)
    reg_acc = jnp.zeros((SUB, LANES), jnp.float32)
    npos_acc = jnp.zeros((SUB, LANES), jnp.float32)

    # Static sub-chunk loop: each sub-chunk works on one (8, 128) anchor plane
    # so vreg pressure stays low even when the DMA'd tile is large.
    for sc in range(n_sub):
        r0 = sc * SUB
        ax1 = afeat_ref[0, r0:r0 + SUB, :]
        ay1 = afeat_ref[1, r0:r0 + SUB, :]
        ax2 = afeat_ref[2, r0:r0 + SUB, :]
        ay2 = afeat_ref[3, r0:r0 + SUB, :]
        area_a = afeat_ref[4, r0:r0 + SUB, :]
        acx = afeat_ref[5, r0:r0 + SUB, :]
        acy = afeat_ref[6, r0:r0 + SUB, :]
        inv_aw = afeat_ref[7, r0:r0 + SUB, :]
        inv_ah = afeat_ref[8, r0:r0 + SUB, :]

        # ---- IoU + argmax over GT boxes (no per-box divide) -----------------
        def body(m, carry):
            b_inter, b_union, b_label, bgx1, bgy1, bgx2, bgy2 = carry
            base = (i * max_m + m) * 4
            bx1 = boxes_ref[base + 0]
            by1 = boxes_ref[base + 1]
            bx2 = boxes_ref[base + 2]
            by2 = boxes_ref[base + 3]
            lab = labels_ref[i * max_m + m]
            area_b = (bx2 - bx1) * (by2 - by1)
            iw = jnp.maximum(jnp.minimum(ax2, bx2) - jnp.maximum(ax1, bx1), 0.0)
            ih = jnp.maximum(jnp.minimum(ay2, by2) - jnp.maximum(ay1, by1), 0.0)
            inter = iw * ih
            union = area_a + area_b - inter
            # strict '>' keeps first-max parity; cross-multiplied comparison
            # removes the in-loop EUP divide (exact rounding ties could pick a
            # different box than a divide-based argmax).
            better = inter * b_union > b_inter * union
            if max_m <= 8:                 # padded iters masked on static path
                better = jnp.logical_and(better, m < nb)
            b_inter = jnp.where(better, inter, b_inter)
            b_union = jnp.where(better, union, b_union)
            b_label = jnp.where(better, lab, b_label)
            bgx1 = jnp.where(better, bx1, bgx1)
            bgy1 = jnp.where(better, by1, bgy1)
            bgx2 = jnp.where(better, bx2, bgx2)
            bgy2 = jnp.where(better, by2, bgy2)
            return b_inter, b_union, b_label, bgx1, bgy1, bgx2, bgy2

        zf = jnp.zeros((SUB, LANES), jnp.float32)
        init = (jnp.full((SUB, LANES), -1.0, jnp.float32),
                jnp.ones((SUB, LANES), jnp.float32),
                jnp.zeros((SUB, LANES), jnp.int32), zf, zf, zf, zf)
        if max_m <= 8:
            # small static box count: partially unrolled scan (LLO visibility)
            carry = lax.fori_loop(0, max_m, body, init, unroll=min(max_m, 8))
        else:
            # ragged box counts: bound the loop by the per-image count nb so
            # padded boxes do no vector work (dynamic trip count).
            carry = lax.fori_loop(0, nb, body, init)
        b_inter, b_union, b_label, bgx1, bgy1, bgx2, bgy2 = carry

        best_iou = b_inter / b_union        # single divide per sub-chunk
        positive = best_iou >= 0.5
        ignore = jnp.logical_and(best_iou >= 0.4, best_iou < 0.5)

        # ---- class loss: single-log focal with in-kernel one-hot ------------
        pred = cls_ref[0, :, r0:r0 + SUB, :].astype(jnp.float32)   # [C, 8, 128]
        cls_iota = lax.broadcasted_iota(jnp.int32, pred.shape, 0)
        match = b_label[None] == cls_iota
        is_pos = jnp.logical_and(match, positive[None])            # tgt == +1
        is_ign = jnp.logical_and(match, ignore[None])              # tgt == -1
        p_t = jnp.where(is_pos, pred, 1.0 - pred)
        w = jnp.where(is_pos, alpha, 1.0 - alpha)
        focal = w * _pow(1.0 - p_t, gamma) * jnp.minimum(-jnp.log(p_t), 100.0)
        focal = jnp.where(is_ign, 0.0, focal)
        cls_acc = cls_acc + jnp.sum(focal, axis=0)

        # ---- reg loss: box encoding + masked smooth-L1 ----------------------
        gw_raw = bgx2 - bgx1
        gh_raw = bgy2 - bgy1
        gcx = bgx1 + 0.5 * gw_raw
        gcy = bgy1 + 0.5 * gh_raw
        # TODO(synk): encode_boxes is not part of the provided source; standard
        # (dx, dy, dw, dh) encoding with unit weights is assumed here.
        tdx = (gcx - acx) * inv_aw
        tdy = (gcy - acy) * inv_ah
        tdw = jnp.log(jnp.where(positive, gw_raw * inv_aw, 1.0))
        tdh = jnp.log(jnp.where(positive, gh_raw * inv_ah, 1.0))

        reg = reg_ref[0, :, r0:r0 + SUB, :].astype(jnp.float32)    # [4, 8, 128]

        def sl1(d):
            ad = jnp.abs(d)
            return jnp.where(ad < beta, half_over_beta * d * d, ad - half_beta)

        per_anchor = (sl1(reg[0] - tdx) + sl1(reg[1] - tdy)
                      + sl1(reg[2] - tdw) + sl1(reg[3] - tdh))
        reg_acc = reg_acc + jnp.where(positive, per_anchor, 0.0)
        npos_acc = npos_acc + positive.astype(jnp.float32)

    out_ref[0, 0] += cls_acc
    out_ref[0, 1] += reg_acc
    out_ref[0, 2] += npos_acc


# ------------------------------ jitted device impl -----------------------------
@functools.partial(
    jax.jit,
    static_argnames=("max_m", "tile_rows", "num_splits", "rows_pad",
                     "alpha", "gamma", "beta"))
def _focal_loss_impl(classifications, regressions, anchors,
                     boxes_flat, labels_flat, nbox, *,
                     max_m, tile_rows, num_splits, rows_pad,
                     alpha, gamma, beta):
    n, a, c = classifications.shape
    tps = rows_pad // (num_splits * tile_rows)   # tiles per split
    a_pad = rows_pad * LANES
    pad = a_pad - a

    # --- anchor-derived features, packed lane-dense: [9, rows_pad, 128] ------
    anc = anchors.astype(jnp.float32)
    ax1, ay1, ax2, ay2 = anc[:, 0], anc[:, 1], anc[:, 2], anc[:, 3]
    aw = ax2 - ax1
    ah = ay2 - ay1
    afeat = jnp.stack(
        [ax1, ay1, ax2, ay2, aw * ah,
         ax1 + 0.5 * aw, ay1 + 0.5 * ah,
         jnp.where(aw > 0, 1.0 / aw, 0.0),      # guarded: padded/degenerate
         jnp.where(ah > 0, 1.0 / ah, 0.0)], axis=0)
    afeat = jnp.pad(afeat, ((0, 0), (0, pad))).reshape(9, rows_pad, LANES)

    # --- lane-dense packing of cls / reg in their NATIVE dtype ----------------
    # TODO(synk): for large num_classes, consume classifications in native
    # (N, A, C) layout (anchors on sublanes, classes on lanes) to avoid this
    # relayout pass; the packed layout is kept here because C is small.
    cls_p = jnp.transpose(jnp.pad(classifications, ((0, 0), (0, pad), (0, 0))),
                          (0, 2, 1)).reshape(n, c, rows_pad, LANES)
    reg_p = jnp.transpose(jnp.pad(regressions, ((0, 0), (0, pad), (0, 0))),
                          (0, 2, 1)).reshape(n, 4, rows_pad, LANES)

    # vmem limit from the actual (double-buffered) block footprint, capped so we
    # never request the whole of v7x's 64 MiB VMEM.
    blk_bytes = (9 * tile_rows * LANES * 4
                 + c * tile_rows * LANES * cls_p.dtype.itemsize
                 + 4 * tile_rows * LANES * reg_p.dtype.itemsize)
    vmem_limit = int(min(32 << 20, max(8 << 20, 6 * blk_bytes + (2 << 20))))

    smem = pl.BlockSpec(memory_space=pltpu.MemorySpace.SMEM)
    out = pl.pallas_call(
        functools.partial(_fused_focal_kernel, max_m=max_m, alpha=float(alpha),
                          gamma=float(gamma), beta=float(beta)),
        grid=(n, num_splits, tps),
        in_specs=[smem, smem, smem,
                  pl.BlockSpec((9, tile_rows, LANES),
                               lambda i, s, t: (0, s * tps + t, 0)),
                  pl.BlockSpec((1, c, tile_rows, LANES),
                               lambda i, s, t: (i, 0, s * tps + t, 0)),
                  pl.BlockSpec((1, 4, tile_rows, LANES),
                               lambda i, s, t: (i, 0, s * tps + t, 0))],
        out_specs=pl.BlockSpec((1, 3, SUB, LANES),
                               lambda i, s, t: (i * num_splits + s, 0, 0, 0)),
        out_shape=jax.ShapeDtypeStruct((n * num_splits, 3, SUB, LANES),
                                       jnp.float32),
        compiler_params=pltpu.CompilerParams(
            dimension_semantics=("parallel", "parallel", "arbitrary"),
            vmem_limit_bytes=vmem_limit),
    )(boxes_flat, labels_flat, nbox, afeat, cls_p, reg_p)

    sums = jnp.sum(out.reshape(n, num_splits, 3, SUB, LANES), axis=(1, 3, 4))
    cls_sum, reg_sum, num_pos = sums[:, 0], sums[:, 1], sums[:, 2]
    class_loss_i = cls_sum / jnp.maximum(num_pos, 1.0)
    reg_loss_i = jnp.where(num_pos > 0.0,
                           reg_sum / (4.0 * jnp.maximum(num_pos, 1.0)), 0.0)
    return {'class_loss': jnp.mean(class_loss_i),
            'reg_loss': jnp.mean(reg_loss_i)}


# ----------------------------- FocalLoss.forward ------------------------------
def focal_loss_forward(classifications, regressions, anchors, targets,
                       alpha=ALPHA, gamma=GAMMA, beta=BETA,
                       tile_rows=32, num_splits=None):
    n, a, c = classifications.shape
    assert len(targets) == n and anchors.shape[0] == a

    # ---- host-side GT tables (single NumPy pass; no device scatters) ----
    max_m = max([int(t['labels'].shape[0]) for t in targets] + [1])
    boxes_np = np.zeros((n, max_m, 4), np.float32)
    labels_np = np.zeros((n, max_m), np.int32)
    nbox_np = np.zeros((n,), np.int32)
    for i, tgt in enumerate(targets):
        m = int(tgt['labels'].shape[0])
        nbox_np[i] = m
        if m > 0:
            boxes_np[i, :m] = np.asarray(tgt['boxes'], np.float32)
            labels_np[i, :m] = np.asarray(tgt['labels'], np.int32)

    # ---- static tiling geometry ----
    rows = pl.cdiv(a, LANES)
    rows8 = pl.cdiv(rows, SUB) * SUB
    tr = max(SUB, min(int(tile_rows), rows8))
    tr = pl.cdiv(tr, SUB) * SUB
    num_tiles = pl.cdiv(rows8, tr)
    if num_splits is None:
        # keep both v7x TensorCores busy when the image axis alone is small/odd
        num_splits = 2 if (n % 2 == 1) else 1
    num_splits = max(1, min(int(num_splits), num_tiles))
    tps = pl.cdiv(num_tiles, num_splits)
    rows_pad = num_splits * tps * tr

    return _focal_loss_impl(
        classifications, regressions, anchors,
        jnp.asarray(boxes_np.reshape(-1)), jnp.asarray(labels_np.reshape(-1)),
        jnp.asarray(nbox_np),
        max_m=max_m, tile_rows=tr, num_splits=num_splits, rows_pad=rows_pad,
        alpha=float(alpha), gamma=float(gamma), beta=float(beta))


# ------------------------- pure-JAX reference (check) -------------------------
def _focal_ref(pred, target, alpha, gamma):
    neg_log_p = jnp.minimum(-jnp.log(pred), 100.0)
    neg_log_1mp = jnp.minimum(-jnp.log(1.0 - pred), 100.0)
    v = (alpha * (1.0 - pred) ** gamma * target * neg_log_p
         + (1.0 - alpha) * pred ** gamma * (1.0 - target) * neg_log_1mp)
    return jnp.sum(jnp.where(target == -1.0, 0.0, v))


def _reference(classifications, regressions, anchors, targets, alpha, gamma, beta):
    n, a, c = classifications.shape
    cls_losses, reg_losses = [], []
    for i, tgt in enumerate(targets):
        labels_ori, boxes_ori = tgt['labels'], tgt['boxes'].astype(jnp.float32)
        cls, reg = classifications[i], regressions[i]
        if labels_ori.shape[0] == 0:
            cls_losses.append(_focal_ref(cls, jnp.zeros_like(cls), alpha, gamma))
            reg_losses.append(jnp.float32(0.0))
            continue
        area_a = (anchors[:, 2] - anchors[:, 0]) * (anchors[:, 3] - anchors[:, 1])
        area_b = (boxes_ori[:, 2] - boxes_ori[:, 0]) * (boxes_ori[:, 3] - boxes_ori[:, 1])
        lt = jnp.maximum(anchors[:, None, :2], boxes_ori[None, :, :2])
        rb = jnp.minimum(anchors[:, None, 2:], boxes_ori[None, :, 2:])
        wh = jnp.clip(rb - lt, 0.0, None)
        inter = wh[..., 0] * wh[..., 1]
        iou_mat = inter / (area_a[:, None] + area_b[None, :] - inter)
        iou, matched = iou_mat.max(axis=1), iou_mat.argmax(axis=1)
        matched_labels = labels_ori[matched]
        positive = iou >= 0.5
        ignore = (iou >= 0.4) & (iou < 0.5)
        onehot = matched_labels[:, None] == jnp.arange(c, dtype=matched_labels.dtype)[None, :]
        labels = jnp.zeros((a, c), jnp.float32)
        labels = jnp.where(positive[:, None] & onehot, 1.0, labels)
        labels = jnp.where(ignore[:, None] & onehot, -1.0, labels)
        num_pos = jnp.sum(positive.astype(jnp.int32))
        cls_losses.append(_focal_ref(cls, labels, alpha, gamma) / jnp.maximum(num_pos, 1))
        mb = boxes_ori[matched]
        aw = anchors[:, 2] - anchors[:, 0]; ah = anchors[:, 3] - anchors[:, 1]
        acx = anchors[:, 0] + 0.5 * aw; acy = anchors[:, 1] + 0.5 * ah
        gw = mb[:, 2] - mb[:, 0]; gh = mb[:, 3] - mb[:, 1]
        gcx = mb[:, 0] + 0.5 * gw; gcy = mb[:, 1] + 0.5 * gh
        enc = jnp.stack([(gcx - acx) / aw, (gcy - acy) / ah,
                         jnp.log(gw / aw), jnp.log(gh / ah)], axis=1)
        d = reg - enc
        ad = jnp.abs(d)
        sl1 = jnp.where(ad < beta, 0.5 * d * d / beta, ad - 0.5 * beta)
        reg_sum = jnp.sum(sl1 * positive[:, None].astype(jnp.float32))
        reg_losses.append(jnp.where(num_pos > 0,
                                    reg_sum / (4.0 * jnp.maximum(num_pos, 1)), 0.0))
    return {'class_loss': sum(cls_losses) / len(cls_losses),
            'reg_loss': sum(reg_losses) / len(reg_losses)}


if __name__ == "__main__":
    key = jax.random.PRNGKey(0)
    k1, k2 = jax.random.split(key)

    # 32x32 grid of anchor centers on a 256x256 image, sizes 8 and 16 -> A=2048
    G = 32
    centers = jnp.arange(G, dtype=jnp.float32) * 8.0 + 4.0
    cy, cx = jnp.meshgrid(centers, centers, indexing='ij')
    cx, cy = cx.reshape(-1), cy.reshape(-1)
    anchor_sets = []
    for s in (8.0, 16.0):
        h = s / 2.0
        anchor_sets.append(jnp.stack([cx - h, cy - h, cx + h, cy + h], axis=1))
    anchors = jnp.concatenate(anchor_sets, axis=0)            # [2048, 4]

    N, A, C = 2, int(anchors.shape[0]), 4
    classifications = jax.nn.sigmoid(jax.random.normal(k1, (N, A, C), jnp.float32))
    regressions = 0.1 * jax.random.normal(k2, (N, A, 4), jnp.float32)

    targets = [
        {'labels': jnp.array([0, 2, 3], jnp.int32),
         'boxes': jnp.array([[0., 0., 8., 8.],
                             [20., 20., 36., 36.],
                             [36., 4., 52., 20.]], jnp.float32)},
        {'labels': jnp.array([1, 3], jnp.int32),
         'boxes': jnp.array([[8., 8., 16., 16.],
                             [36., 44., 52., 60.]], jnp.float32)},
    ]

    def check(out, ref, name):
        out = jax.tree_util.tree_map(jax.block_until_ready, out)
        assert jnp.allclose(out['class_loss'], ref['class_loss'],
                            rtol=1e-4, atol=1e-5), (name, out['class_loss'], ref['class_loss'])
        assert jnp.allclose(out['reg_loss'], ref['reg_loss'],
                            rtol=1e-4, atol=1e-5), (name, out['reg_loss'], ref['reg_loss'])

    ref = _reference(classifications, regressions, anchors, targets, ALPHA, GAMMA, BETA)

    # default tiling (one tile, in-kernel 8-row sub-chunks)
    check(focal_loss_forward(classifications, regressions, anchors, targets),
          ref, "default")
    # split reduction axis across two accumulator rows (v7x 2nd-TensorCore path)
    check(focal_loss_forward(classifications, regressions, anchors, targets,
                             tile_rows=8, num_splits=2), ref, "split")

    # truncated anchor set: exercises anchor padding + multi-tile accumulation
    A2 = 1920
    ref_t = _reference(classifications[:, :A2], regressions[:, :A2],
                       anchors[:A2], targets, ALPHA, GAMMA, BETA)
    check(focal_loss_forward(classifications[:, :A2], regressions[:, :A2],
                             anchors[:A2], targets, tile_rows=8, num_splits=1),
          ref_t, "padded-multitile")

    # empty-target image (nb == 0 path, odd N -> auto split clamped)
    empty_targets = [{'labels': jnp.zeros((0,), jnp.int32),
                      'boxes': jnp.zeros((0, 4), jnp.float32)}]
    ref_e = _reference(classifications[:1], regressions[:1], anchors,
                       empty_targets, ALPHA, GAMMA, BETA)
    check(focal_loss_forward(classifications[:1], regressions[:1], anchors,
                             empty_targets), ref_e, "empty")

    print("KERNEL_OK")
</pallas_src>

<mosaic_0001>
module attributes {stable_mosaic.version = 11 : i64} {
  func.func @_fused_focal_kernel(%arg0: i32, %arg1: i32, %arg2: i32, %arg3: memref<24xf32, #tpu.memory_space<smem>>, %arg4: memref<6xi32, #tpu.memory_space<smem>>, %arg5: memref<2xi32, #tpu.memory_space<smem>>, %arg6: memref<9x16x128xf32, #tpu.memory_space<vmem>>, %arg7: memref<1x4x16x128xf32, #tpu.memory_space<vmem>>, %arg8: memref<1x4x16x128xf32, #tpu.memory_space<vmem>>, %arg9: memref<1x3x8x128xf32, #tpu.memory_space<vmem>>) attributes {dimension_semantics = [#tpu.dimension_semantics<parallel>, #tpu.dimension_semantics<parallel>, #tpu.dimension_semantics<arbitrary>], iteration_bounds = array<i64: 2, 1, 1>, scalar_prefetch = 0 : i64, scratch_operands = 0 : i64, tpu.core_type = #tpu.core_type<tc>, window_params = [{transform_indices = @transform_0, window_bounds = array<i64: 24>}, {transform_indices = @transform_1, window_bounds = array<i64: 6>}, {transform_indices = @transform_2, window_bounds = array<i64: 2>}, {transform_indices = @transform_3, window_bounds = array<i64: 9, 16, 128>}, {transform_indices = @transform_4, window_bounds = array<i64: 1, 4, 16, 128>}, {transform_indices = @transform_5, window_bounds = array<i64: 1, 4, 16, 128>}, {transform_indices = @transform_6, window_bounds = array<i64: 1, 3, 8, 128>}]} {
    %c0_i32 = arith.constant 0 : i32
    %0 = arith.cmpi eq, %arg2, %c0_i32 : i32
    %1 = arith.extui %0 : i1 to i32
    %c0_i32_0 = arith.constant 0 : i32
    %2 = arith.cmpi ne, %1, %c0_i32_0 : i32
    scf.if %2 {
      %cst_210 = arith.constant 0.000000e+00 : f32
      %656 = vector.broadcast %cst_210 : f32 to vector<1x3x8x128xf32>
      %c0_211 = arith.constant 0 : index
      %c0_212 = arith.constant 0 : index
      %c0_213 = arith.constant 0 : index
      %c0_214 = arith.constant 0 : index
      %657 = vector.load %arg9[%c0_211, %c0_212, %c0_213, %c0_214] : memref<1x3x8x128xf32, #tpu.memory_space<vmem>>, vector<1x3x8x128xf32>
      tpu.vector_store %arg9[%c0_211, %c0_212, %c0_213, %c0_214], %656 {strides = array<i32>} : memref<1x3x8x128xf32, #tpu.memory_space<vmem>>, vector<1x3x8x128xf32>,
    } else {
    }
    %3 = arith.index_cast %arg0 : i32 to index
    %4 = memref.load %arg5[%3] : memref<2xi32, #tpu.memory_space<smem>>
    %cst = arith.constant 0.000000e+00 : f32
    %5 = vector.broadcast %cst : f32 to vector<8x128xf32>
    %cst_1 = arith.constant 0.000000e+00 : f32
    %6 = vector.broadcast %cst_1 : f32 to vector<8x128xf32>
    %cst_2 = arith.constant 0.000000e+00 : f32
    %7 = vector.broadcast %cst_2 : f32 to vector<8x128xf32>
    %c0 = arith.constant 0 : index
    %c0_3 = arith.constant 0 : index
    %c0_4 = arith.constant 0 : index
    %8 = vector.load %arg6[%c0, %c0_3, %c0_4] : memref<9x16x128xf32, #tpu.memory_space<vmem>>, vector<1x8x128xf32>
    %9 = vector.shape_cast %8 : vector<1x8x128xf32> to vector<8x128xf32>
    %c1 = arith.constant 1 : index
    %c0_5 = arith.constant 0 : index
    %c0_6 = arith.constant 0 : index
    %10 = vector.load %arg6[%c1, %c0_5, %c0_6] : memref<9x16x128xf32, #tpu.memory_space<vmem>>, vector<1x8x128xf32>
    %11 = vector.shape_cast %10 : vector<1x8x128xf32> to vector<8x128xf32>
    %c2 = arith.constant 2 : index
    %c0_7 = arith.constant 0 : index
    %c0_8 = arith.constant 0 : index
    %12 = vector.load %arg6[%c2, %c0_7, %c0_8] : memref<9x16x128xf32, #tpu.memory_space<vmem>>, vector<1x8x128xf32>
    %13 = vector.shape_cast %12 : vector<1x8x128xf32> to vector<8x128xf32>
    %c3 = arith.constant 3 : index
    %c0_9 = arith.constant 0 : index
    %c0_10 = arith.constant 0 : index
    %14 = vector.load %arg6[%c3, %c0_9, %c0_10] : memref<9x16x128xf32, #tpu.memory_space<vmem>>, vector<1x8x128xf32>
    %15 = vector.shape_cast %14 : vector<1x8x128xf32> to vector<8x128xf32>
    %c4 = arith.constant 4 : index
    %c0_11 = arith.constant 0 : index
    %c0_12 = arith.constant 0 : index
    %16 = vector.load %arg6[%c4, %c0_11, %c0_12] : memref<9x16x128xf32, #tpu.memory_space<vmem>>, vector<1x8x128xf32>
    %17 = vector.shape_cast %16 : vector<1x8x128xf32> to vector<8x128xf32>
    %c5 = arith.constant 5 : index
    %c0_13 = arith.constant 0 : index
    %c0_14 = arith.constant 0 : index
    %18 = vector.load %arg6[%c5, %c0_13, %c0_14] : memref<9x16x128xf32, #tpu.memory_space<vmem>>, vector<1x8x128xf32>
    %19 = vector.shape_cast %18 : vector<1x8x128xf32> to vector<8x128xf32>
    %c6 = arith.constant 6 : index
    %c0_15 = arith.constant 0 : index
    %c0_16 = arith.constant 0 : index
    %20 = vector.load %arg6[%c6, %c0_15, %c0_16] : memref<9x16x128xf32, #tpu.memory_space<vmem>>, vector<1x8x128xf32>
    %21 = vector.shape_cast %20 : vector<1x8x128xf32> to vector<8x128xf32>
    %c7 = arith.constant 7 : index
    %c0_17 = arith.constant 0 : index
    %c0_18 = arith.constant 0 : index
    %22 = vector.load %arg6[%c7, %c0_17, %c0_18] : memref<9x16x128xf32, #tpu.memory_space<vmem>>, vector<1x8x128xf32>
    %23 = vector.shape_cast %22 : vector<1x8x128xf32> to vector<8x128xf32>
    %c8 = arith.constant 8 : index
    %c0_19 = arith.constant 0 : index
    %c0_20 = arith.constant 0 : index
    %24 = vector.load %arg6[%c8, %c0_19, %c0_20] : memref<9x16x128xf32, #tpu.memory_space<vmem>>, vector<1x8x128xf32>
    %25 = vector.shape_cast %24 : vector<1x8x128xf32> to vector<8x128xf32>
    %cst_21 = arith.constant 0.000000e+00 : f32
    %26 = vector.broadcast %cst_21 : f32 to vector<8x128xf32>
    %cst_22 = arith.constant -1.000000e+00 : f32
    %27 = vector.broadcast %cst_22 : f32 to vector<8x128xf32>
    %cst_23 = arith.constant 1.000000e+00 : f32
    %28 = vector.broadcast %cst_23 : f32 to vector<8x128xf32>
    %c0_i32_24 = arith.constant 0 : i32
    %29 = vector.broadcast %c0_i32_24 : i32 to vector<8x128xi32>
    %c0_i32_25 = arith.constant 0 : i32
    %c3_i32 = arith.constant 3 : i32
    %30 = arith.muli %arg0, %c3_i32 : i32
    %31 = arith.addi %30, %c0_i32_25 : i32
    %c4_i32 = arith.constant 4 : i32
    %32 = arith.muli %31, %c4_i32 : i32
    %c0_i32_26 = arith.constant 0 : i32
    %33 = arith.addi %32, %c0_i32_26 : i32
    %34 = arith.index_cast %33 : i32 to index
    %35 = memref.load %arg3[%34] : memref<24xf32, #tpu.memory_space<smem>>
    %c1_i32 = arith.constant 1 : i32
    %36 = arith.addi %32, %c1_i32 : i32
    %37 = arith.index_cast %36 : i32 to index
    %38 = memref.load %arg3[%37] : memref<24xf32, #tpu.memory_space<smem>>
    %c2_i32 = arith.constant 2 : i32
    %39 = arith.addi %32, %c2_i32 : i32
    %40 = arith.index_cast %39 : i32 to index
    %41 = memref.load %arg3[%40] : memref<24xf32, #tpu.memory_space<smem>>
    %c3_i32_27 = arith.constant 3 : i32
    %42 = arith.addi %32, %c3_i32_27 : i32
    %43 = arith.index_cast %42 : i32 to index
    %44 = memref.load %arg3[%43] : memref<24xf32, #tpu.memory_space<smem>>
    %c3_i32_28 = arith.constant 3 : i32
    %45 = arith.muli %arg0, %c3_i32_28 : i32
    %46 = arith.addi %45, %c0_i32_25 : i32
    %47 = arith.index_cast %46 : i32 to index
    %48 = memref.load %arg4[%47] : memref<6xi32, #tpu.memory_space<smem>>
    %49 = arith.subf %41, %35 : f32
    %50 = arith.subf %44, %38 : f32
    %51 = arith.mulf %49, %50 : f32
    %52 = vector.broadcast %41 : f32 to vector<8x128xf32>
    %53 = arith.minimumf %13, %52 : vector<8x128xf32>
    %54 = vector.broadcast %35 : f32 to vector<8x128xf32>
    %55 = arith.maximumf %9, %54 : vector<8x128xf32>
    %56 = arith.subf %53, %55 : vector<8x128xf32>
    %cst_29 = arith.constant 0.000000e+00 : f32
    %57 = vector.broadcast %cst_29 : f32 to vector<8x128xf32>
    %58 = arith.maximumf %56, %57 : vector<8x128xf32>
    %59 = vector.broadcast %44 : f32 to vector<8x128xf32>
    %60 = arith.minimumf %15, %59 : vector<8x128xf32>
    %61 = vector.broadcast %38 : f32 to vector<8x128xf32>
    %62 = arith.maximumf %11, %61 : vector<8x128xf32>
    %63 = arith.subf %60, %62 : vector<8x128xf32>
    %cst_30 = arith.constant 0.000000e+00 : f32
    %64 = vector.broadcast %cst_30 : f32 to vector<8x128xf32>
    %65 = arith.maximumf %63, %64 : vector<8x128xf32>
    %66 = arith.mulf %58, %65 : vector<8x128xf32>
    %67 = vector.broadcast %51 : f32 to vector<8x128xf32>
    %68 = arith.addf %17, %67 : vector<8x128xf32>
    %69 = arith.subf %68, %66 : vector<8x128xf32>
    %70 = arith.mulf %66, %28 : vector<8x128xf32>
    %71 = arith.mulf %27, %69 : vector<8x128xf32>
    %72 = arith.cmpf ogt, %70, %71 : vector<8x128xf32>
    %73 = arith.cmpi slt, %c0_i32_25, %4 : i32
    %74 = vector.broadcast %73 : i1 to vector<8x128xi1>
    %75 = arith.andi %72, %74 : vector<8x128xi1>
    %76 = arith.select %75, %66, %27 : vector<8x128xi1>, vector<8x128xf32>
    %77 = arith.select %75, %69, %28 : vector<8x128xi1>, vector<8x128xf32>
    %78 = vector.broadcast %48 : i32 to vector<8x128xi32>
    %79 = arith.select %75, %78, %29 : vector<8x128xi1>, vector<8x128xi32>
    %80 = vector.broadcast %35 : f32 to vector<8x128xf32>
    %81 = arith.select %75, %80, %26 : vector<8x128xi1>, vector<8x128xf32>
    %82 = vector.broadcast %38 : f32 to vector<8x128xf32>
    %83 = arith.select %75, %82, %26 : vector<8x128xi1>, vector<8x128xf32>
    %84 = vector.broadcast %41 : f32 to vector<8x128xf32>
    %85 = arith.select %75, %84, %26 : vector<8x128xi1>, vector<8x128xf32>
    %86 = vector.broadcast %44 : f32 to vector<8x128xf32>
    %87 = arith.select %75, %86, %26 : vector<8x128xi1>, vector<8x128xf32>
    %c1_i32_31 = arith.constant 1 : i32
    %c3_i32_32 = arith.constant 3 : i32
    %88 = arith.muli %arg0, %c3_i32_32 : i32
    %89 = arith.addi %88, %c1_i32_31 : i32
    %c4_i32_33 = arith.constant 4 : i32
    %90 = arith.muli %89, %c4_i32_33 : i32
    %c0_i32_34 = arith.constant 0 : i32
    %91 = arith.addi %90, %c0_i32_34 : i32
    %92 = arith.index_cast %91 : i32 to index
    %93 = memref.load %arg3[%92] : memref<24xf32, #tpu.memory_space<smem>>
    %c1_i32_35 = arith.constant 1 : i32
    %94 = arith.addi %90, %c1_i32_35 : i32
    %95 = arith.index_cast %94 : i32 to index
    %96 = memref.load %arg3[%95] : memref<24xf32, #tpu.memory_space<smem>>
    %c2_i32_36 = arith.constant 2 : i32
    %97 = arith.addi %90, %c2_i32_36 : i32
    %98 = arith.index_cast %97 : i32 to index
    %99 = memref.load %arg3[%98] : memref<24xf32, #tpu.memory_space<smem>>
    %c3_i32_37 = arith.constant 3 : i32
    %100 = arith.addi %90, %c3_i32_37 : i32
    %101 = arith.index_cast %100 : i32 to index
    %102 = memref.load %arg3[%101] : memref<24xf32, #tpu.memory_space<smem>>
    %c3_i32_38 = arith.constant 3 : i32
    %103 = arith.muli %arg0, %c3_i32_38 : i32
    %104 = arith.addi %103, %c1_i32_31 : i32
    %105 = arith.index_cast %104 : i32 to index
    %106 = memref.load %arg4[%105] : memref<6xi32, #tpu.memory_space<smem>>
    %107 = arith.subf %99, %93 : f32
    %108 = arith.subf %102, %96 : f32
    %109 = arith.mulf %107, %108 : f32
    %110 = vector.broadcast %99 : f32 to vector<8x128xf32>
    %111 = arith.minimumf %13, %110 : vector<8x128xf32>
    %112 = vector.broadcast %93 : f32 to vector<8x128xf32>
    %113 = arith.maximumf %9, %112 : vector<8x128xf32>
    %114 = arith.subf %111, %113 : vector<8x128xf32>
    %cst_39 = arith.constant 0.000000e+00 : f32
    %115 = vector.broadcast %cst_39 : f32 to vector<8x128xf32>
    %116 = arith.maximumf %114, %115 : vector<8x128xf32>
    %117 = vector.broadcast %102 : f32 to vector<8x128xf32>
    %118 = arith.minimumf %15, %117 : vector<8x128xf32>
    %119 = vector.broadcast %96 : f32 to vector<8x128xf32>
    %120 = arith.maximumf %11, %119 : vector<8x128xf32>
    %121 = arith.subf %118, %120 : vector<8x128xf32>
    %cst_40 = arith.constant 0.000000e+00 : f32
    %122 = vector.broadcast %cst_40 : f32 to vector<8x128xf32>
    %123 = arith.maximumf %121, %122 : vector<8x128xf32>
    %124 = arith.mulf %116, %123 : vector<8x128xf32>
    %125 = vector.broadcast %109 : f32 to vector<8x128xf32>
    %126 = arith.addf %17, %125 : vector<8x128xf32>
    %127 = arith.subf %126, %124 : vector<8x128xf32>
    %128 = arith.mulf %124, %77 : vector<8x128xf32>
    %129 = arith.mulf %76, %127 : vector<8x128xf32>
    %130 = arith.cmpf ogt, %128, %129 : vector<8x128xf32>
    %131 = arith.cmpi slt, %c1_i32_31, %4 : i32
    %132 = vector.broadcast %131 : i1 to vector<8x128xi1>
    %133 = arith.andi %130, %132 : vector<8x128xi1>
    %134 = arith.select %133, %124, %76 : vector<8x128xi1>, vector<8x128xf32>
    %135 = arith.select %133, %127, %77 : vector<8x128xi1>, vector<8x128xf32>
    %136 = vector.broadcast %106 : i32 to vector<8x128xi32>
    %137 = arith.select %133, %136, %79 : vector<8x128xi1>, vector<8x128xi32>
    %138 = vector.broadcast %93 : f32 to vector<8x128xf32>
    %139 = arith.select %133, %138, %81 : vector<8x128xi1>, vector<8x128xf32>
    %140 = vector.broadcast %96 : f32 to vector<8x128xf32>
    %141 = arith.select %133, %140, %83 : vector<8x128xi1>, vector<8x128xf32>
    %142 = vector.broadcast %99 : f32 to vector<8x128xf32>
    %143 = arith.select %133, %142, %85 : vector<8x128xi1>, vector<8x128xf32>
    %144 = vector.broadcast %102 : f32 to vector<8x128xf32>
    %145 = arith.select %133, %144, %87 : vector<8x128xi1>, vector<8x128xf32>
    %c2_i32_41 = arith.constant 2 : i32
    %c3_i32_42 = arith.constant 3 : i32
    %146 = arith.muli %arg0, %c3_i32_42 : i32
    %147 = arith.addi %146, %c2_i32_41 : i32
    %c4_i32_43 = arith.constant 4 : i32
    %148 = arith.muli %147, %c4_i32_43 : i32
    %c0_i32_44 = arith.constant 0 : i32
    %149 = arith.addi %148, %c0_i32_44 : i32
    %150 = arith.index_cast %149 : i32 to index
    %151 = memref.load %arg3[%150] : memref<24xf32, #tpu.memory_space<smem>>
    %c1_i32_45 = arith.constant 1 : i32
    %152 = arith.addi %148, %c1_i32_45 : i32
    %153 = arith.index_cast %152 : i32 to index
    %154 = memref.load %arg3[%153] : memref<24xf32, #tpu.memory_space<smem>>
    %c2_i32_46 = arith.constant 2 : i32
    %155 = arith.addi %148, %c2_i32_46 : i32
    %156 = arith.index_cast %155 : i32 to index
    %157 = memref.load %arg3[%156] : memref<24xf32, #tpu.memory_space<smem>>
    %c3_i32_47 = arith.constant 3 : i32
    %158 = arith.addi %148, %c3_i32_47 : i32
    %159 = arith.index_cast %158 : i32 to index
    %160 = memref.load %arg3[%159] : memref<24xf32, #tpu.memory_space<smem>>
    %c3_i32_48 = arith.constant 3 : i32
    %161 = arith.muli %arg0, %c3_i32_48 : i32
    %162 = arith.addi %161, %c2_i32_41 : i32
    %163 = arith.index_cast %162 : i32 to index
    %164 = memref.load %arg4[%163] : memref<6xi32, #tpu.memory_space<smem>>
    %165 = arith.subf %157, %151 : f32
    %166 = arith.subf %160, %154 : f32
    %167 = arith.mulf %165, %166 : f32
    %168 = vector.broadcast %157 : f32 to vector<8x128xf32>
    %169 = arith.minimumf %13, %168 : vector<8x128xf32>
    %170 = vector.broadcast %151 : f32 to vector<8x128xf32>
    %171 = arith.maximumf %9, %170 : vector<8x128xf32>
    %172 = arith.subf %169, %171 : vector<8x128xf32>
    %cst_49 = arith.constant 0.000000e+00 : f32
    %173 = vector.broadcast %cst_49 : f32 to vector<8x128xf32>
    %174 = arith.maximumf %172, %173 : vector<8x128xf32>
    %175 = vector.broadcast %160 : f32 to vector<8x128xf32>
    %176 = arith.minimumf %15, %175 : vector<8x128xf32>
    %177 = vector.broadcast %154 : f32 to vector<8x128xf32>
    %178 = arith.maximumf %11, %177 : vector<8x128xf32>
    %179 = arith.subf %176, %178 : vector<8x128xf32>
    %cst_50 = arith.constant 0.000000e+00 : f32
    %180 = vector.broadcast %cst_50 : f32 to vector<8x128xf32>
    %181 = arith.maximumf %179, %180 : vector<8x128xf32>
    %182 = arith.mulf %174, %181 : vector<8x128xf32>
    %183 = vector.broadcast %167 : f32 to vector<8x128xf32>
    %184 = arith.addf %17, %183 : vector<8x128xf32>
    %185 = arith.subf %184, %182 : vector<8x128xf32>
    %186 = arith.mulf %182, %135 : vector<8x128xf32>
    %187 = arith.mulf %134, %185 : vector<8x128xf32>
    %188 = arith.cmpf ogt, %186, %187 : vector<8x128xf32>
    %189 = arith.cmpi slt, %c2_i32_41, %4 : i32
    %190 = vector.broadcast %189 : i1 to vector<8x128xi1>
    %191 = arith.andi %188, %190 : vector<8x128xi1>
    %192 = arith.select %191, %182, %134 : vector<8x128xi1>, vector<8x128xf32>
    %193 = arith.select %191, %185, %135 : vector<8x128xi1>, vector<8x128xf32>
    %194 = vector.broadcast %164 : i32 to vector<8x128xi32>
    %195 = arith.select %191, %194, %137 : vector<8x128xi1>, vector<8x128xi32>
    %196 = vector.broadcast %151 : f32 to vector<8x128xf32>
    %197 = arith.select %191, %196, %139 : vector<8x128xi1>, vector<8x128xf32>
    %198 = vector.broadcast %154 : f32 to vector<8x128xf32>
    %199 = arith.select %191, %198, %141 : vector<8x128xi1>, vector<8x128xf32>
    %200 = vector.broadcast %157 : f32 to vector<8x128xf32>
    %201 = arith.select %191, %200, %143 : vector<8x128xi1>, vector<8x128xf32>
    %202 = vector.broadcast %160 : f32 to vector<8x128xf32>
    %203 = arith.select %191, %202, %145 : vector<8x128xi1>, vector<8x128xf32>
    %c3_i32_51 = arith.constant 3 : i32
    %204 = arith.divf %192, %193 : vector<8x128xf32>
    %cst_52 = arith.constant 5.000000e-01 : f32
    %205 = vector.broadcast %cst_52 : f32 to vector<8x128xf32>
    %206 = arith.cmpf oge, %204, %205 : vector<8x128xf32>
    %cst_53 = arith.constant 4.000000e-01 : f32
    %207 = vector.broadcast %cst_53 : f32 to vector<8x128xf32>
    %208 = arith.cmpf oge, %204, %207 : vector<8x128xf32>
    %cst_54 = arith.constant 5.000000e-01 : f32
    %209 = vector.broadcast %cst_54 : f32 to vector<8x128xf32>
    %210 = arith.cmpf olt, %204, %209 : vector<8x128xf32>
    %211 = arith.andi %208, %210 : vector<8x128xi1>
    %c0_55 = arith.constant 0 : index
    %c0_56 = arith.constant 0 : index
    %c0_57 = arith.constant 0 : index
    %c0_58 = arith.constant 0 : index
    %212 = vector.load %arg7[%c0_55, %c0_56, %c0_57, %c0_58] : memref<1x4x16x128xf32, #tpu.memory_space<vmem>>, vector<1x4x8x128xf32>
    %213 = vector.shape_cast %212 : vector<1x4x8x128xf32> to vector<4x8x128xf32>
    %214 = tpu.iota {dimensions = array<i32: 0>} : vector<4x8x128xi32>
    %215 = vector.shape_cast %195 : vector<8x128xi32> to vector<1x8x128xi32>
    %216 = vector.broadcast %215 : vector<1x8x128xi32> to vector<4x8x128xi32>
    %217 = arith.cmpi eq, %216, %214 : vector<4x8x128xi32>
    %218 = vector.shape_cast %206 : vector<8x128xi1> to vector<1x8x128xi1>
    %219 = vector.broadcast %218 : vector<1x8x128xi1> to vector<4x8x128xi1>
    %220 = arith.andi %217, %219 : vector<4x8x128xi1>
    %221 = vector.shape_cast %211 : vector<8x128xi1> to vector<1x8x128xi1>
    %222 = vector.broadcast %221 : vector<1x8x128xi1> to vector<4x8x128xi1>
    %223 = arith.andi %217, %222 : vector<4x8x128xi1>
    %cst_59 = arith.constant 1.000000e+00 : f32
    %224 = vector.broadcast %cst_59 : f32 to vector<4x8x128xf32>
    %225 = arith.subf %224, %213 : vector<4x8x128xf32>
    %226 = arith.select %220, %213, %225 : vector<4x8x128xi1>, vector<4x8x128xf32>
    %cst_60 = arith.constant 2.500000e-01 : f32
    %cst_61 = arith.constant 7.500000e-01 : f32
    %227 = vector.broadcast %cst_60 : f32 to vector<4x8x128xf32>
    %228 = vector.broadcast %cst_61 : f32 to vector<4x8x128xf32>
    %229 = arith.select %220, %227, %228 : vector<4x8x128xi1>, vector<4x8x128xf32>
    %cst_62 = arith.constant 1.000000e+00 : f32
    %230 = vector.broadcast %cst_62 : f32 to vector<4x8x128xf32>
    %231 = arith.subf %230, %226 : vector<4x8x128xf32>
    %232 = arith.mulf %231, %231 : vector<4x8x128xf32>
    %233 = arith.mulf %229, %232 : vector<4x8x128xf32>
    %234 = math.log %226 : vector<4x8x128xf32>
    %cst_63 = arith.constant 0.000000e+00 : f32
    %235 = vector.broadcast %cst_63 : f32 to vector<4x8x128xf32>
    %236 = arith.subf %235, %234 : vector<4x8x128xf32>
    %cst_64 = arith.constant 1.000000e+02 : f32
    %237 = vector.broadcast %cst_64 : f32 to vector<4x8x128xf32>
    %238 = arith.minimumf %236, %237 : vector<4x8x128xf32>
    %239 = arith.mulf %233, %238 : vector<4x8x128xf32>
    %cst_65 = arith.constant 0.000000e+00 : f32
    %240 = vector.broadcast %cst_65 : f32 to vector<4x8x128xf32>
    %241 = arith.select %223, %240, %239 : vector<4x8x128xi1>, vector<4x8x128xf32>
    %cst_66 = arith.constant dense<0.000000e+00> : vector<8x128xf32>
    %242 = vector.multi_reduction <add>, %241, %cst_66 [0] : vector<4x8x128xf32> to vector<8x128xf32>
    %243 = arith.addf %5, %242 : vector<8x128xf32>
    %244 = arith.subf %201, %197 : vector<8x128xf32>
    %245 = arith.subf %203, %199 : vector<8x128xf32>
    %cst_67 = arith.constant 5.000000e-01 : f32
    %246 = vector.broadcast %cst_67 : f32 to vector<8x128xf32>
    %247 = arith.mulf %246, %244 : vector<8x128xf32>
    %248 = arith.addf %197, %247 : vector<8x128xf32>
    %cst_68 = arith.constant 5.000000e-01 : f32
    %249 = vector.broadcast %cst_68 : f32 to vector<8x128xf32>
    %250 = arith.mulf %249, %245 : vector<8x128xf32>
    %251 = arith.addf %199, %250 : vector<8x128xf32>
    %252 = arith.subf %248, %19 : vector<8x128xf32>
    %253 = arith.mulf %252, %23 : vector<8x128xf32>
    %254 = arith.subf %251, %21 : vector<8x128xf32>
    %255 = arith.mulf %254, %25 : vector<8x128xf32>
    %256 = arith.mulf %244, %23 : vector<8x128xf32>
    %cst_69 = arith.constant 1.000000e+00 : f32
    %257 = vector.broadcast %cst_69 : f32 to vector<8x128xf32>
    %258 = arith.select %206, %256, %257 : vector<8x128xi1>, vector<8x128xf32>
    %259 = math.log %258 : vector<8x128xf32>
    %260 = arith.mulf %245, %25 : vector<8x128xf32>
    %cst_70 = arith.constant 1.000000e+00 : f32
    %261 = vector.broadcast %cst_70 : f32 to vector<8x128xf32>
    %262 = arith.select %206, %260, %261 : vector<8x128xi1>, vector<8x128xf32>
    %263 = math.log %262 : vector<8x128xf32>
    %c0_71 = arith.constant 0 : index
    %c0_72 = arith.constant 0 : index
    %c0_73 = arith.constant 0 : index
    %c0_74 = arith.constant 0 : index
    %264 = vector.load %arg8[%c0_71, %c0_72, %c0_73, %c0_74] : memref<1x4x16x128xf32, #tpu.memory_space<vmem>>, vector<1x4x8x128xf32>
    %265 = vector.shape_cast %264 : vector<1x4x8x128xf32> to vector<4x8x128xf32>
    %266 = vector.extract_strided_slice %265 {offsets = [0, 0, 0], sizes = [1, 8, 128], strides = [1, 1, 1]} : vector<4x8x128xf32> to vector<1x8x128xf32>
    %267 = vector.shape_cast %266 : vector<1x8x128xf32> to vector<8x128xf32>
    %268 = arith.subf %267, %253 : vector<8x128xf32>
    %269 = math.absf %268 : vector<8x128xf32>
    %cst_75 = arith.constant 0.111111112 : f32
    %270 = vector.broadcast %cst_75 : f32 to vector<8x128xf32>
    %271 = arith.cmpf olt, %269, %270 : vector<8x128xf32>
    %cst_76 = arith.constant 4.500000e+00 : f32
    %272 = vector.broadcast %cst_76 : f32 to vector<8x128xf32>
    %273 = arith.mulf %272, %268 : vector<8x128xf32>
    %274 = arith.mulf %273, %268 : vector<8x128xf32>
    %cst_77 = arith.constant 0.055555556 : f32
    %275 = vector.broadcast %cst_77 : f32 to vector<8x128xf32>
    %276 = arith.subf %269, %275 : vector<8x128xf32>
    %277 = arith.select %271, %274, %276 : vector<8x128xi1>, vector<8x128xf32>
    %278 = vector.extract_strided_slice %265 {offsets = [1, 0, 0], sizes = [1, 8, 128], strides = [1, 1, 1]} : vector<4x8x128xf32> to vector<1x8x128xf32>
    %279 = vector.shape_cast %278 : vector<1x8x128xf32> to vector<8x128xf32>
    %280 = arith.subf %279, %255 : vector<8x128xf32>
    %281 = math.absf %280 : vector<8x128xf32>
    %cst_78 = arith.constant 0.111111112 : f32
    %282 = vector.broadcast %cst_78 : f32 to vector<8x128xf32>
    %283 = arith.cmpf olt, %281, %282 : vector<8x128xf32>
    %cst_79 = arith.constant 4.500000e+00 : f32
    %284 = vector.broadcast %cst_79 : f32 to vector<8x128xf32>
    %285 = arith.mulf %284, %280 : vector<8x128xf32>
    %286 = arith.mulf %285, %280 : vector<8x128xf32>
    %cst_80 = arith.constant 0.055555556 : f32
    %287 = vector.broadcast %cst_80 : f32 to vector<8x128xf32>
    %288 = arith.subf %281, %287 : vector<8x128xf32>
    %289 = arith.select %283, %286, %288 : vector<8x128xi1>, vector<8x128xf32>
    %290 = arith.addf %277, %289 : vector<8x128xf32>
    %291 = vector.extract_strided_slice %265 {offsets = [2, 0, 0], sizes = [1, 8, 128], strides = [1, 1, 1]} : vector<4x8x128xf32> to vector<1x8x128xf32>
    %292 = vector.shape_cast %291 : vector<1x8x128xf32> to vector<8x128xf32>
    %293 = arith.subf %292, %259 : vector<8x128xf32>
    %294 = math.absf %293 : vector<8x128xf32>
    %cst_81 = arith.constant 0.111111112 : f32
    %295 = vector.broadcast %cst_81 : f32 to vector<8x128xf32>
    %296 = arith.cmpf olt, %294, %295 : vector<8x128xf32>
    %cst_82 = arith.constant 4.500000e+00 : f32
    %297 = vector.broadcast %cst_82 : f32 to vector<8x128xf32>
    %298 = arith.mulf %297, %293 : vector<8x128xf32>
    %299 = arith.mulf %298, %293 : vector<8x128xf32>
    %cst_83 = arith.constant 0.055555556 : f32
    %300 = vector.broadcast %cst_83 : f32 to vector<8x128xf32>
    %301 = arith.subf %294, %300 : vector<8x128xf32>
    %302 = arith.select %296, %299, %301 : vector<8x128xi1>, vector<8x128xf32>
    %303 = arith.addf %290, %302 : vector<8x128xf32>
    %304 = vector.extract_strided_slice %265 {offsets = [3, 0, 0], sizes = [1, 8, 128], strides = [1, 1, 1]} : vector<4x8x128xf32> to vector<1x8x128xf32>
    %305 = vector.shape_cast %304 : vector<1x8x128xf32> to vector<8x128xf32>
    %306 = arith.subf %305, %263 : vector<8x128xf32>
    %307 = math.absf %306 : vector<8x128xf32>
    %cst_84 = arith.constant 0.111111112 : f32
    %308 = vector.broadcast %cst_84 : f32 to vector<8x128xf32>
    %309 = arith.cmpf olt, %307, %308 : vector<8x128xf32>
    %cst_85 = arith.constant 4.500000e+00 : f32
    %310 = vector.broadcast %cst_85 : f32 to vector<8x128xf32>
    %311 = arith.mulf %310, %306 : vector<8x128xf32>
    %312 = arith.mulf %311, %306 : vector<8x128xf32>
    %cst_86 = arith.constant 0.055555556 : f32
    %313 = vector.broadcast %cst_86 : f32 to vector<8x128xf32>
    %314 = arith.subf %307, %313 : vector<8x128xf32>
    %315 = arith.select %309, %312, %314 : vector<8x128xi1>, vector<8x128xf32>
    %316 = arith.addf %303, %315 : vector<8x128xf32>
    %cst_87 = arith.constant 0.000000e+00 : f32
    %317 = vector.broadcast %cst_87 : f32 to vector<8x128xf32>
    %318 = arith.select %206, %316, %317 : vector<8x128xi1>, vector<8x128xf32>
    %319 = arith.addf %6, %318 : vector<8x128xf32>
    %320 = arith.extui %206 : vector<8x128xi1> to vector<8x128xi32>
    %321 = arith.sitofp %320 : vector<8x128xi32> to vector<8x128xf32>
    %322 = arith.addf %7, %321 : vector<8x128xf32>
    %c0_88 = arith.constant 0 : index
    %c8_89 = arith.constant 8 : index
    %c0_90 = arith.constant 0 : index
    %323 = vector.load %arg6[%c0_88, %c8_89, %c0_90] : memref<9x16x128xf32, #tpu.memory_space<vmem>>, vector<1x8x128xf32>
    %324 = vector.shape_cast %323 : vector<1x8x128xf32> to vector<8x128xf32>
    %c1_91 = arith.constant 1 : index
    %c8_92 = arith.constant 8 : index
    %c0_93 = arith.constant 0 : index
    %325 = vector.load %arg6[%c1_91, %c8_92, %c0_93] : memref<9x16x128xf32, #tpu.memory_space<vmem>>, vector<1x8x128xf32>
    %326 = vector.shape_cast %325 : vector<1x8x128xf32> to vector<8x128xf32>
    %c2_94 = arith.constant 2 : index
    %c8_95 = arith.constant 8 : index
    %c0_96 = arith.constant 0 : index
    %327 = vector.load %arg6[%c2_94, %c8_95, %c0_96] : memref<9x16x128xf32, #tpu.memory_space<vmem>>, vector<1x8x128xf32>
    %328 = vector.shape_cast %327 : vector<1x8x128xf32> to vector<8x128xf32>
    %c3_97 = arith.constant 3 : index
    %c8_98 = arith.constant 8 : index
    %c0_99 = arith.constant 0 : index
    %329 = vector.load %arg6[%c3_97, %c8_98, %c0_99] : memref<9x16x128xf32, #tpu.memory_space<vmem>>, vector<1x8x128xf32>
    %330 = vector.shape_cast %329 : vector<1x8x128xf32> to vector<8x128xf32>
    %c4_100 = arith.constant 4 : index
    %c8_101 = arith.constant 8 : index
    %c0_102 = arith.constant 0 : index
    %331 = vector.load %arg6[%c4_100, %c8_101, %c0_102] : memref<9x16x128xf32, #tpu.memory_space<vmem>>, vector<1x8x128xf32>
    %332 = vector.shape_cast %331 : vector<1x8x128xf32> to vector<8x128xf32>
    %c5_103 = arith.constant 5 : index
    %c8_104 = arith.constant 8 : index
    %c0_105 = arith.constant 0 : index
    %333 = vector.load %arg6[%c5_103, %c8_104, %c0_105] : memref<9x16x128xf32, #tpu.memory_space<vmem>>, vector<1x8x128xf32>
    %334 = vector.shape_cast %333 : vector<1x8x128xf32> to vector<8x128xf32>
    %c6_106 = arith.constant 6 : index
    %c8_107 = arith.constant 8 : index
    %c0_108 = arith.constant 0 : index
    %335 = vector.load %arg6[%c6_106, %c8_107, %c0_108] : memref<9x16x128xf32, #tpu.memory_space<vmem>>, vector<1x8x128xf32>
    %336 = vector.shape_cast %335 : vector<1x8x128xf32> to vector<8x128xf32>
    %c7_109 = arith.constant 7 : index
    %c8_110 = arith.constant 8 : index
    %c0_111 = arith.constant 0 : index
    %337 = vector.load %arg6[%c7_109, %c8_110, %c0_111] : memref<9x16x128xf32, #tpu.memory_space<vmem>>, vector<1x8x128xf32>
    %338 = vector.shape_cast %337 : vector<1x8x128xf32> to vector<8x128xf32>
    %c8_112 = arith.constant 8 : index
    %c8_113 = arith.constant 8 : index
    %c0_114 = arith.constant 0 : index
    %339 = vector.load %arg6[%c8_112, %c8_113, %c0_114] : memref<9x16x128xf32, #tpu.memory_space<vmem>>, vector<1x8x128xf32>
    %340 = vector.shape_cast %339 : vector<1x8x128xf32> to vector<8x128xf32>
    %cst_115 = arith.constant 0.000000e+00 : f32
    %341 = vector.broadcast %cst_115 : f32 to vector<8x128xf32>
    %cst_116 = arith.constant -1.000000e+00 : f32
    %342 = vector.broadcast %cst_116 : f32 to vector<8x128xf32>
    %cst_117 = arith.constant 1.000000e+00 : f32
    %343 = vector.broadcast %cst_117 : f32 to vector<8x128xf32>
    %c0_i32_118 = arith.constant 0 : i32
    %344 = vector.broadcast %c0_i32_118 : i32 to vector<8x128xi32>
    %c0_i32_119 = arith.constant 0 : i32
    %c3_i32_120 = arith.constant 3 : i32
    %345 = arith.muli %arg0, %c3_i32_120 : i32
    %346 = arith.addi %345, %c0_i32_119 : i32
    %c4_i32_121 = arith.constant 4 : i32
    %347 = arith.muli %346, %c4_i32_121 : i32
    %c0_i32_122 = arith.constant 0 : i32
    %348 = arith.addi %347, %c0_i32_122 : i32
    %349 = arith.index_cast %348 : i32 to index
    %350 = memref.load %arg3[%349] : memref<24xf32, #tpu.memory_space<smem>>
    %c1_i32_123 = arith.constant 1 : i32
    %351 = arith.addi %347, %c1_i32_123 : i32
    %352 = arith.index_cast %351 : i32 to index
    %353 = memref.load %arg3[%352] : memref<24xf32, #tpu.memory_space<smem>>
    %c2_i32_124 = arith.constant 2 : i32
    %354 = arith.addi %347, %c2_i32_124 : i32
    %355 = arith.index_cast %354 : i32 to index
    %356 = memref.load %arg3[%355] : memref<24xf32, #tpu.memory_space<smem>>
    %c3_i32_125 = arith.constant 3 : i32
    %357 = arith.addi %347, %c3_i32_125 : i32
    %358 = arith.index_cast %357 : i32 to index
    %359 = memref.load %arg3[%358] : memref<24xf32, #tpu.memory_space<smem>>
    %c3_i32_126 = arith.constant 3 : i32
    %360 = arith.muli %arg0, %c3_i32_126 : i32
    %361 = arith.addi %360, %c0_i32_119 : i32
    %362 = arith.index_cast %361 : i32 to index
    %363 = memref.load %arg4[%362] : memref<6xi32, #tpu.memory_space<smem>>
    %364 = arith.subf %356, %350 : f32
    %365 = arith.subf %359, %353 : f32
    %366 = arith.mulf %364, %365 : f32
    %367 = vector.broadcast %356 : f32 to vector<8x128xf32>
    %368 = arith.minimumf %328, %367 : vector<8x128xf32>
    %369 = vector.broadcast %350 : f32 to vector<8x128xf32>
    %370 = arith.maximumf %324, %369 : vector<8x128xf32>
    %371 = arith.subf %368, %370 : vector<8x128xf32>
    %cst_127 = arith.constant 0.000000e+00 : f32
    %372 = vector.broadcast %cst_127 : f32 to vector<8x128xf32>
    %373 = arith.maximumf %371, %372 : vector<8x128xf32>
    %374 = vector.broadcast %359 : f32 to vector<8x128xf32>
    %375 = arith.minimumf %330, %374 : vector<8x128xf32>
    %376 = vector.broadcast %353 : f32 to vector<8x128xf32>
    %377 = arith.maximumf %326, %376 : vector<8x128xf32>
    %378 = arith.subf %375, %377 : vector<8x128xf32>
    %cst_128 = arith.constant 0.000000e+00 : f32
    %379 = vector.broadcast %cst_128 : f32 to vector<8x128xf32>
    %380 = arith.maximumf %378, %379 : vector<8x128xf32>
    %381 = arith.mulf %373, %380 : vector<8x128xf32>
    %382 = vector.broadcast %366 : f32 to vector<8x128xf32>
    %383 = arith.addf %332, %382 : vector<8x128xf32>
    %384 = arith.subf %383, %381 : vector<8x128xf32>
    %385 = arith.mulf %381, %343 : vector<8x128xf32>
    %386 = arith.mulf %342, %384 : vector<8x128xf32>
    %387 = arith.cmpf ogt, %385, %386 : vector<8x128xf32>
    %388 = arith.cmpi slt, %c0_i32_119, %4 : i32
    %389 = vector.broadcast %388 : i1 to vector<8x128xi1>
    %390 = arith.andi %387, %389 : vector<8x128xi1>
    %391 = arith.select %390, %381, %342 : vector<8x128xi1>, vector<8x128xf32>
    %392 = arith.select %390, %384, %343 : vector<8x128xi1>, vector<8x128xf32>
    %393 = vector.broadcast %363 : i32 to vector<8x128xi32>
    %394 = arith.select %390, %393, %344 : vector<8x128xi1>, vector<8x128xi32>
    %395 = vector.broadcast %350 : f32 to vector<8x128xf32>
    %396 = arith.select %390, %395, %341 : vector<8x128xi1>, vector<8x128xf32>
    %397 = vector.broadcast %353 : f32 to vector<8x128xf32>
    %398 = arith.select %390, %397, %341 : vector<8x128xi1>, vector<8x128xf32>
    %399 = vector.broadcast %356 : f32 to vector<8x128xf32>
    %400 = arith.select %390, %399, %341 : vector<8x128xi1>, vector<8x128xf32>
    %401 = vector.broadcast %359 : f32 to vector<8x128xf32>
    %402 = arith.select %390, %401, %341 : vector<8x128xi1>, vector<8x128xf32>
    %c1_i32_129 = arith.constant 1 : i32
    %c3_i32_130 = arith.constant 3 : i32
    %403 = arith.muli %arg0, %c3_i32_130 : i32
    %404 = arith.addi %403, %c1_i32_129 : i32
    %c4_i32_131 = arith.constant 4 : i32
    %405 = arith.muli %404, %c4_i32_131 : i32
    %c0_i32_132 = arith.constant 0 : i32
    %406 = arith.addi %405, %c0_i32_132 : i32
    %407 = arith.index_cast %406 : i32 to index
    %408 = memref.load %arg3[%407] : memref<24xf32, #tpu.memory_space<smem>>
    %c1_i32_133 = arith.constant 1 : i32
    %409 = arith.addi %405, %c1_i32_133 : i32
    %410 = arith.index_cast %409 : i32 to index
    %411 = memref.load %arg3[%410] : memref<24xf32, #tpu.memory_space<smem>>
    %c2_i32_134 = arith.constant 2 : i32
    %412 = arith.addi %405, %c2_i32_134 : i32
    %413 = arith.index_cast %412 : i32 to index
    %414 = memref.load %arg3[%413] : memref<24xf32, #tpu.memory_space<smem>>
    %c3_i32_135 = arith.constant 3 : i32
    %415 = arith.addi %405, %c3_i32_135 : i32
    %416 = arith.index_cast %415 : i32 to index
    %417 = memref.load %arg3[%416] : memref<24xf32, #tpu.memory_space<smem>>
    %c3_i32_136 = arith.constant 3 : i32
    %418 = arith.muli %arg0, %c3_i32_136 : i32
    %419 = arith.addi %418, %c1_i32_129 : i32
    %420 = arith.index_cast %419 : i32 to index
    %421 = memref.load %arg4[%420] : memref<6xi32, #tpu.memory_space<smem>>
    %422 = arith.subf %414, %408 : f32
    %423 = arith.subf %417, %411 : f32
    %424 = arith.mulf %422, %423 : f32
    %425 = vector.broadcast %414 : f32 to vector<8x128xf32>
    %426 = arith.minimumf %328, %425 : vector<8x128xf32>
    %427 = vector.broadcast %408 : f32 to vector<8x128xf32>
    %428 = arith.maximumf %324, %427 : vector<8x128xf32>
    %429 = arith.subf %426, %428 : vector<8x128xf32>
    %cst_137 = arith.constant 0.000000e+00 : f32
    %430 = vector.broadcast %cst_137 : f32 to vector<8x128xf32>
    %431 = arith.maximumf %429, %430 : vector<8x128xf32>
    %432 = vector.broadcast %417 : f32 to vector<8x128xf32>
    %433 = arith.minimumf %330, %432 : vector<8x128xf32>
    %434 = vector.broadcast %411 : f32 to vector<8x128xf32>
    %435 = arith.maximumf %326, %434 : vector<8x128xf32>
    %436 = arith.subf %433, %435 : vector<8x128xf32>
    %cst_138 = arith.constant 0.000000e+00 : f32
    %437 = vector.broadcast %cst_138 : f32 to vector<8x128xf32>
    %438 = arith.maximumf %436, %437 : vector<8x128xf32>
    %439 = arith.mulf %431, %438 : vector<8x128xf32>
    %440 = vector.broadcast %424 : f32 to vector<8x128xf32>
    %441 = arith.addf %332, %440 : vector<8x128xf32>
    %442 = arith.subf %441, %439 : vector<8x128xf32>
    %443 = arith.mulf %439, %392 : vector<8x128xf32>
    %444 = arith.mulf %391, %442 : vector<8x128xf32>
    %445 = arith.cmpf ogt, %443, %444 : vector<8x128xf32>
    %446 = arith.cmpi slt, %c1_i32_129, %4 : i32
    %447 = vector.broadcast %446 : i1 to vector<8x128xi1>
    %448 = arith.andi %445, %447 : vector<8x128xi1>
    %449 = arith.select %448, %439, %391 : vector<8x128xi1>, vector<8x128xf32>
    %450 = arith.select %448, %442, %392 : vector<8x128xi1>, vector<8x128xf32>
    %451 = vector.broadcast %421 : i32 to vector<8x128xi32>
    %452 = arith.select %448, %451, %394 : vector<8x128xi1>, vector<8x128xi32>
    %453 = vector.broadcast %408 : f32 to vector<8x128xf32>
    %454 = arith.select %448, %453, %396 : vector<8x128xi1>, vector<8x128xf32>
    %455 = vector.broadcast %411 : f32 to vector<8x128xf32>
    %456 = arith.select %448, %455, %398 : vector<8x128xi1>, vector<8x128xf32>
    %457 = vector.broadcast %414 : f32 to vector<8x128xf32>
    %458 = arith.select %448, %457, %400 : vector<8x128xi1>, vector<8x128xf32>
    %459 = vector.broadcast %417 : f32 to vector<8x128xf32>
    %460 = arith.select %448, %459, %402 : vector<8x128xi1>, vector<8x128xf32>
    %c2_i32_139 = arith.constant 2 : i32
    %c3_i32_140 = arith.constant 3 : i32
    %461 = arith.muli %arg0, %c3_i32_140 : i32
    %462 = arith.addi %461, %c2_i32_139 : i32
    %c4_i32_141 = arith.constant 4 : i32
    %463 = arith.muli %462, %c4_i32_141 : i32
    %c0_i32_142 = arith.constant 0 : i32
    %464 = arith.addi %463, %c0_i32_142 : i32
    %465 = arith.index_cast %464 : i32 to index
    %466 = memref.load %arg3[%465] : memref<24xf32, #tpu.memory_space<smem>>
    %c1_i32_143 = arith.constant 1 : i32
    %467 = arith.addi %463, %c1_i32_143 : i32
    %468 = arith.index_cast %467 : i32 to index
    %469 = memref.load %arg3[%468] : memref<24xf32, #tpu.memory_space<smem>>
    %c2_i32_144 = arith.constant 2 : i32
    %470 = arith.addi %463, %c2_i32_144 : i32
    %471 = arith.index_cast %470 : i32 to index
    %472 = memref.load %arg3[%471] : memref<24xf32, #tpu.memory_space<smem>>
    %c3_i32_145 = arith.constant 3 : i32
    %473 = arith.addi %463, %c3_i32_145 : i32
    %474 = arith.index_cast %473 : i32 to index
    %475 = memref.load %arg3[%474] : memref<24xf32, #tpu.memory_space<smem>>
    %c3_i32_146 = arith.constant 3 : i32
    %476 = arith.muli %arg0, %c3_i32_146 : i32
    %477 = arith.addi %476, %c2_i32_139 : i32
    %478 = arith.index_cast %477 : i32 to index
    %479 = memref.load %arg4[%478] : memref<6xi32, #tpu.memory_space<smem>>
    %480 = arith.subf %472, %466 : f32
    %481 = arith.subf %475, %469 : f32
    %482 = arith.mulf %480, %481 : f32
    %483 = vector.broadcast %472 : f32 to vector<8x128xf32>
    %484 = arith.minimumf %328, %483 : vector<8x128xf32>
    %485 = vector.broadcast %466 : f32 to vector<8x128xf32>
    %486 = arith.maximumf %324, %485 : vector<8x128xf32>
    %487 = arith.subf %484, %486 : vector<8x128xf32>
    %cst_147 = arith.constant 0.000000e+00 : f32
    %488 = vector.broadcast %cst_147 : f32 to vector<8x128xf32>
    %489 = arith.maximumf %487, %488 : vector<8x128xf32>
    %490 = vector.broadcast %475 : f32 to vector<8x128xf32>
    %491 = arith.minimumf %330, %490 : vector<8x128xf32>
    %492 = vector.broadcast %469 : f32 to vector<8x128xf32>
    %493 = arith.maximumf %326, %492 : vector<8x128xf32>
    %494 = arith.subf %491, %493 : vector<8x128xf32>
    %cst_148 = arith.constant 0.000000e+00 : f32
    %495 = vector.broadcast %cst_148 : f32 to vector<8x128xf32>
    %496 = arith.maximumf %494, %495 : vector<8x128xf32>
    %497 = arith.mulf %489, %496 : vector<8x128xf32>
    %498 = vector.broadcast %482 : f32 to vector<8x128xf32>
    %499 = arith.addf %332, %498 : vector<8x128xf32>
    %500 = arith.subf %499, %497 : vector<8x128xf32>
    %501 = arith.mulf %497, %450 : vector<8x128xf32>
    %502 = arith.mulf %449, %500 : vector<8x128xf32>
    %503 = arith.cmpf ogt, %501, %502 : vector<8x128xf32>
    %504 = arith.cmpi slt, %c2_i32_139, %4 : i32
    %505 = vector.broadcast %504 : i1 to vector<8x128xi1>
    %506 = arith.andi %503, %505 : vector<8x128xi1>
    %507 = arith.select %506, %497, %449 : vector<8x128xi1>, vector<8x128xf32>
    %508 = arith.select %506, %500, %450 : vector<8x128xi1>, vector<8x128xf32>
    %509 = vector.broadcast %479 : i32 to vector<8x128xi32>
    %510 = arith.select %506, %509, %452 : vector<8x128xi1>, vector<8x128xi32>
    %511 = vector.broadcast %466 : f32 to vector<8x128xf32>
    %512 = arith.select %506, %511, %454 : vector<8x128xi1>, vector<8x128xf32>
    %513 = vector.broadcast %469 : f32 to vector<8x128xf32>
    %514 = arith.select %506, %513, %456 : vector<8x128xi1>, vector<8x128xf32>
    %515 = vector.broadcast %472 : f32 to vector<8x128xf32>
    %516 = arith.select %506, %515, %458 : vector<8x128xi1>, vector<8x128xf32>
    %517 = vector.broadcast %475 : f32 to vector<8x128xf32>
    %518 = arith.select %506, %517, %460 : vector<8x128xi1>, vector<8x128xf32>
    %c3_i32_149 = arith.constant 3 : i32
    %519 = arith.divf %507, %508 : vector<8x128xf32>
    %cst_150 = arith.constant 5.000000e-01 : f32
    %520 = vector.broadcast %cst_150 : f32 to vector<8x128xf32>
    %521 = arith.cmpf oge, %519, %520 : vector<8x128xf32>
    %cst_151 = arith.constant 4.000000e-01 : f32
    %522 = vector.broadcast %cst_151 : f32 to vector<8x128xf32>
    %523 = arith.cmpf oge, %519, %522 : vector<8x128xf32>
    %cst_152 = arith.constant 5.000000e-01 : f32
    %524 = vector.broadcast %cst_152 : f32 to vector<8x128xf32>
    %525 = arith.cmpf olt, %519, %524 : vector<8x128xf32>
    %526 = arith.andi %523, %525 : vector<8x128xi1>
    %c0_153 = arith.constant 0 : index
    %c0_154 = arith.constant 0 : index
    %c8_155 = arith.constant 8 : index
    %c0_156 = arith.constant 0 : index
    %527 = vector.load %arg7[%c0_153, %c0_154, %c8_155, %c0_156] : memref<1x4x16x128xf32, #tpu.memory_space<vmem>>, vector<1x4x8x128xf32>
    %528 = vector.shape_cast %527 : vector<1x4x8x128xf32> to vector<4x8x128xf32>
    %529 = tpu.iota {dimensions = array<i32: 0>} : vector<4x8x128xi32>
    %530 = vector.shape_cast %510 : vector<8x128xi32> to vector<1x8x128xi32>
    %531 = vector.broadcast %530 : vector<1x8x128xi32> to vector<4x8x128xi32>
    %532 = arith.cmpi eq, %531, %529 : vector<4x8x128xi32>
    %533 = vector.shape_cast %521 : vector<8x128xi1> to vector<1x8x128xi1>
    %534 = vector.broadcast %533 : vector<1x8x128xi1> to vector<4x8x128xi1>
    %535 = arith.andi %532, %534 : vector<4x8x128xi1>
    %536 = vector.shape_cast %526 : vector<8x128xi1> to vector<1x8x128xi1>
    %537 = vector.broadcast %536 : vector<1x8x128xi1> to vector<4x8x128xi1>
    %538 = arith.andi %532, %537 : vector<4x8x128xi1>
    %cst_157 = arith.constant 1.000000e+00 : f32
    %539 = vector.broadcast %cst_157 : f32 to vector<4x8x128xf32>
    %540 = arith.subf %539, %528 : vector<4x8x128xf32>
    %541 = arith.select %535, %528, %540 : vector<4x8x128xi1>, vector<4x8x128xf32>
    %cst_158 = arith.constant 2.500000e-01 : f32
    %cst_159 = arith.constant 7.500000e-01 : f32
    %542 = vector.broadcast %cst_158 : f32 to vector<4x8x128xf32>
    %543 = vector.broadcast %cst_159 : f32 to vector<4x8x128xf32>
    %544 = arith.select %535, %542, %543 : vector<4x8x128xi1>, vector<4x8x128xf32>
    %cst_160 = arith.constant 1.000000e+00 : f32
    %545 = vector.broadcast %cst_160 : f32 to vector<4x8x128xf32>
    %546 = arith.subf %545, %541 : vector<4x8x128xf32>
    %547 = arith.mulf %546, %546 : vector<4x8x128xf32>
    %548 = arith.mulf %544, %547 : vector<4x8x128xf32>
    %549 = math.log %541 : vector<4x8x128xf32>
    %cst_161 = arith.constant 0.000000e+00 : f32
    %550 = vector.broadcast %cst_161 : f32 to vector<4x8x128xf32>
    %551 = arith.subf %550, %549 : vector<4x8x128xf32>
    %cst_162 = arith.constant 1.000000e+02 : f32
    %552 = vector.broadcast %cst_162 : f32 to vector<4x8x128xf32>
    %553 = arith.minimumf %551, %552 : vector<4x8x128xf32>
    %554 = arith.mulf %548, %553 : vector<4x8x128xf32>
    %cst_163 = arith.constant 0.000000e+00 : f32
    %555 = vector.broadcast %cst_163 : f32 to vector<4x8x128xf32>
    %556 = arith.select %538, %555, %554 : vector<4x8x128xi1>, vector<4x8x128xf32>
    %cst_164 = arith.constant dense<0.000000e+00> : vector<8x128xf32>
    %557 = vector.multi_reduction <add>, %556, %cst_164 [0] : vector<4x8x128xf32> to vector<8x128xf32>
    %558 = arith.addf %243, %557 : vector<8x128xf32>
    %559 = arith.subf %516, %512 : vector<8x128xf32>
    %560 = arith.subf %518, %514 : vector<8x128xf32>
    %cst_165 = arith.constant 5.000000e-01 : f32
    %561 = vector.broadcast %cst_165 : f32 to vector<8x128xf32>
    %562 = arith.mulf %561, %559 : vector<8x128xf32>
    %563 = arith.addf %512, %562 : vector<8x128xf32>
    %cst_166 = arith.constant 5.000000e-01 : f32
    %564 = vector.broadcast %cst_166 : f32 to vector<8x128xf32>
    %565 = arith.mulf %564, %560 : vector<8x128xf32>
    %566 = arith.addf %514, %565 : vector<8x128xf32>
    %567 = arith.subf %563, %334 : vector<8x128xf32>
    %568 = arith.mulf %567, %338 : vector<8x128xf32>
    %569 = arith.subf %566, %336 : vector<8x128xf32>
    %570 = arith.mulf %569, %340 : vector<8x128xf32>
    %571 = arith.mulf %559, %338 : vector<8x128xf32>
    %cst_167 = arith.constant 1.000000e+00 : f32
    %572 = vector.broadcast %cst_167 : f32 to vector<8x128xf32>
    %573 = arith.select %521, %571, %572 : vector<8x128xi1>, vector<8x128xf32>
    %574 = math.log %573 : vector<8x128xf32>
    %575 = arith.mulf %560, %340 : vector<8x128xf32>
    %cst_168 = arith.constant 1.000000e+00 : f32
    %576 = vector.broadcast %cst_168 : f32 to vector<8x128xf32>
    %577 = arith.select %521, %575, %576 : vector<8x128xi1>, vector<8x128xf32>
    %578 = math.log %577 : vector<8x128xf32>
    %c0_169 = arith.constant 0 : index
    %c0_170 = arith.constant 0 : index
    %c8_171 = arith.constant 8 : index
    %c0_172 = arith.constant 0 : index
    %579 = vector.load %arg8[%c0_169, %c0_170, %c8_171, %c0_172] : memref<1x4x16x128xf32, #tpu.memory_space<vmem>>, vector<1x4x8x128xf32>
    %580 = vector.shape_cast %579 : vector<1x4x8x128xf32> to vector<4x8x128xf32>
    %581 = vector.extract_strided_slice %580 {offsets = [0, 0, 0], sizes = [1, 8, 128], strides = [1, 1, 1]} : vector<4x8x128xf32> to vector<1x8x128xf32>
    %582 = vector.shape_cast %581 : vector<1x8x128xf32> to vector<8x128xf32>
    %583 = arith.subf %582, %568 : vector<8x128xf32>
    %584 = math.absf %583 : vector<8x128xf32>
    %cst_173 = arith.constant 0.111111112 : f32
    %585 = vector.broadcast %cst_173 : f32 to vector<8x128xf32>
    %586 = arith.cmpf olt, %584, %585 : vector<8x128xf32>
    %cst_174 = arith.constant 4.500000e+00 : f32
    %587 = vector.broadcast %cst_174 : f32 to vector<8x128xf32>
    %588 = arith.mulf %587, %583 : vector<8x128xf32>
    %589 = arith.mulf %588, %583 : vector<8x128xf32>
    %cst_175 = arith.constant 0.055555556 : f32
    %590 = vector.broadcast %cst_175 : f32 to vector<8x128xf32>
    %591 = arith.subf %584, %590 : vector<8x128xf32>
    %592 = arith.select %586, %589, %591 : vector<8x128xi1>, vector<8x128xf32>
    %593 = vector.extract_strided_slice %580 {offsets = [1, 0, 0], sizes = [1, 8, 128], strides = [1, 1, 1]} : vector<4x8x128xf32> to vector<1x8x128xf32>
    %594 = vector.shape_cast %593 : vector<1x8x128xf32> to vector<8x128xf32>
    %595 = arith.subf %594, %570 : vector<8x128xf32>
    %596 = math.absf %595 : vector<8x128xf32>
    %cst_176 = arith.constant 0.111111112 : f32
    %597 = vector.broadcast %cst_176 : f32 to vector<8x128xf32>
    %598 = arith.cmpf olt, %596, %597 : vector<8x128xf32>
    %cst_177 = arith.constant 4.500000e+00 : f32
    %599 = vector.broadcast %cst_177 : f32 to vector<8x128xf32>
    %600 = arith.mulf %599, %595 : vector<8x128xf32>
    %601 = arith.mulf %600, %595 : vector<8x128xf32>
    %cst_178 = arith.constant 0.055555556 : f32
    %602 = vector.broadcast %cst_178 : f32 to vector<8x128xf32>
    %603 = arith.subf %596, %602 : vector<8x128xf32>
    %604 = arith.select %598, %601, %603 : vector<8x128xi1>, vector<8x128xf32>
    %605 = arith.addf %592, %604 : vector<8x128xf32>
    %606 = vector.extract_strided_slice %580 {offsets = [2, 0, 0], sizes = [1, 8, 128], strides = [1, 1, 1]} : vector<4x8x128xf32> to vector<1x8x128xf32>
    %607 = vector.shape_cast %606 : vector<1x8x128xf32> to vector<8x128xf32>
    %608 = arith.subf %607, %574 : vector<8x128xf32>
    %609 = math.absf %608 : vector<8x128xf32>
    %cst_179 = arith.constant 0.111111112 : f32
    %610 = vector.broadcast %cst_179 : f32 to vector<8x128xf32>
    %611 = arith.cmpf olt, %609, %610 : vector<8x128xf32>
    %cst_180 = arith.constant 4.500000e+00 : f32
    %612 = vector.broadcast %cst_180 : f32 to vector<8x128xf32>
    %613 = arith.mulf %612, %608 : vector<8x128xf32>
    %614 = arith.mulf %613, %608 : vector<8x128xf32>
    %cst_181 = arith.constant 0.055555556 : f32
    %615 = vector.broadcast %cst_181 : f32 to vector<8x128xf32>
    %616 = arith.subf %609, %615 : vector<8x128xf32>
    %617 = arith.select %611, %614, %616 : vector<8x128xi1>, vector<8x128xf32>
    %618 = arith.addf %605, %617 : vector<8x128xf32>
    %619 = vector.extract_strided_slice %580 {offsets = [3, 0, 0], sizes = [1, 8, 128], strides = [1, 1, 1]} : vector<4x8x128xf32> to vector<1x8x128xf32>
    %620 = vector.shape_cast %619 : vector<1x8x128xf32> to vector<8x128xf32>
    %621 = arith.subf %620, %578 : vector<8x128xf32>
    %622 = math.absf %621 : vector<8x128xf32>
    %cst_182 = arith.constant 0.111111112 : f32
    %623 = vector.broadcast %cst_182 : f32 to vector<8x128xf32>
    %624 = arith.cmpf olt, %622, %623 : vector<8x128xf32>
    %cst_183 = arith.constant 4.500000e+00 : f32
    %625 = vector.broadcast %cst_183 : f32 to vector<8x128xf32>
    %626 = arith.mulf %625, %621 : vector<8x128xf32>
    %627 = arith.mulf %626, %621 : vector<8x128xf32>
    %cst_184 = arith.constant 0.055555556 : f32
    %628 = vector.broadcast %cst_184 : f32 to vector<8x128xf32>
    %629 = arith.subf %622, %628 : vector<8x128xf32>
    %630 = arith.select %624, %627, %629 : vector<8x128xi1>, vector<8x128xf32>
    %631 = arith.addf %618, %630 : vector<8x128xf32>
    %cst_185 = arith.constant 0.000000e+00 : f32
    %632 = vector.broadcast %cst_185 : f32 to vector<8x128xf32>
    %633 = arith.select %521, %631, %632 : vector<8x128xi1>, vector<8x128xf32>
    %634 = arith.addf %319, %633 : vector<8x128xf32>
    %635 = arith.extui %521 : vector<8x128xi1> to vector<8x128xi32>
    %636 = arith.sitofp %635 : vector<8x128xi32> to vector<8x128xf32>
    %637 = arith.addf %322, %636 : vector<8x128xf32>
    %c0_186 = arith.constant 0 : index
    %c0_187 = arith.constant 0 : index
    %c0_188 = arith.constant 0 : index
    %c0_189 = arith.constant 0 : index
    %638 = vector.load %arg9[%c0_186, %c0_187, %c0_188, %c0_189] : memref<1x3x8x128xf32, #tpu.memory_space<vmem>>, vector<1x1x8x128xf32>
    %639 = vector.shape_cast %638 : vector<1x1x8x128xf32> to vector<8x128xf32>
    %640 = arith.addf %639, %558 : vector<8x128xf32>
    %c0_190 = arith.constant 0 : index
    %c0_191 = arith.constant 0 : index
    %c0_192 = arith.constant 0 : index
    %c0_193 = arith.constant 0 : index
    %641 = vector.load %arg9[%c0_190, %c0_191, %c0_192, %c0_193] : memref<1x3x8x128xf32, #tpu.memory_space<vmem>>, vector<1x1x8x128xf32>
    %642 = vector.shape_cast %641 : vector<1x1x8x128xf32> to vector<8x128xf32>
    %643 = vector.shape_cast %640 : vector<8x128xf32> to vector<1x1x8x128xf32>
    tpu.vector_store %arg9[%c0_190, %c0_191, %c0_192, %c0_193], %643 {strides = array<i32>} : memref<1x3x8x128xf32, #tpu.memory_space<vmem>>, vector<1x1x8x128xf32>,
    %c0_194 = arith.constant 0 : index
    %c1_195 = arith.constant 1 : index
    %c0_196 = arith.constant 0 : index
    %c0_197 = arith.constant 0 : index
    %644 = vector.load %arg9[%c0_194, %c1_195, %c0_196, %c0_197] : memref<1x3x8x128xf32, #tpu.memory_space<vmem>>, vector<1x1x8x128xf32>
    %645 = vector.shape_cast %644 : vector<1x1x8x128xf32> to vector<8x128xf32>
    %646 = arith.addf %645, %634 : vector<8x128xf32>
    %c0_198 = arith.constant 0 : index
    %c1_199 = arith.constant 1 : index
    %c0_200 = arith.constant 0 : index
    %c0_201 = arith.constant 0 : index
    %647 = vector.load %arg9[%c0_198, %c1_199, %c0_200, %c0_201] : memref<1x3x8x128xf32, #tpu.memory_space<vmem>>, vector<1x1x8x128xf32>
    %648 = vector.shape_cast %647 : vector<1x1x8x128xf32> to vector<8x128xf32>
    %649 = vector.shape_cast %646 : vector<8x128xf32> to vector<1x1x8x128xf32>
    tpu.vector_store %arg9[%c0_198, %c1_199, %c0_200, %c0_201], %649 {strides = array<i32>} : memref<1x3x8x128xf32, #tpu.memory_space<vmem>>, vector<1x1x8x128xf32>,
    %c0_202 = arith.constant 0 : index
    %c2_203 = arith.constant 2 : index
    %c0_204 = arith.constant 0 : index
    %c0_205 = arith.constant 0 : index
    %650 = vector.load %arg9[%c0_202, %c2_203, %c0_204, %c0_205] : memref<1x3x8x128xf32, #tpu.memory_space<vmem>>, vector<1x1x8x128xf32>
    %651 = vector.shape_cast %650 : vector<1x1x8x128xf32> to vector<8x128xf32>
    %652 = arith.addf %651, %637 : vector<8x128xf32>
    %c0_206 = arith.constant 0 : index
    %c2_207 = arith.constant 2 : index
    %c0_208 = arith.constant 0 : index
    %c0_209 = arith.constant 0 : index
    %653 = vector.load %arg9[%c0_206, %c2_207, %c0_208, %c0_209] : memref<1x3x8x128xf32, #tpu.memory_space<vmem>>, vector<1x1x8x128xf32>
    %654 = vector.shape_cast %653 : vector<1x1x8x128xf32> to vector<8x128xf32>
    %655 = vector.shape_cast %652 : vector<8x128xf32> to vector<1x1x8x128xf32>
    tpu.vector_store %arg9[%c0_206, %c2_207, %c0_208, %c0_209], %655 {strides = array<i32>} : memref<1x3x8x128xf32, #tpu.memory_space<vmem>>, vector<1x1x8x128xf32>,
    return
  }
  func.func @transform_0(%arg0: i32, %arg1: i32, %arg2: i32) -> i32 {
    %c0_i32 = arith.constant 0 : i32
    %c0_i32_0 = arith.constant 0 : i32
    return %c0_i32 : i32
  }
  func.func @transform_1(%arg0: i32, %arg1: i32, %arg2: i32) -> i32 {
    %c0_i32 = arith.constant 0 : i32
    %c0_i32_0 = arith.constant 0 : i32
    return %c0_i32 : i32
  }
  func.func @transform_2(%arg0: i32, %arg1: i32, %arg2: i32) -> i32 {
    %c0_i32 = arith.constant 0 : i32
    %c0_i32_0 = arith.constant 0 : i32
    return %c0_i32 : i32
  }
  func.func @transform_3(%arg0: i32, %arg1: i32, %arg2: i32) -> (i32, i32, i32) {
    %c1_i32 = arith.constant 1 : i32
    %0 = arith.muli %arg1, %c1_i32 : i32
    %1 = arith.addi %0, %arg2 : i32
    %c0_i32 = arith.constant 0 : i32
    %c0_i32_0 = arith.constant 0 : i32
    %c0_i32_1 = arith.constant 0 : i32
    return %c0_i32, %1, %c0_i32_0 : i32, i32, i32
  }
  func.func @transform_4(%arg0: i32, %arg1: i32, %arg2: i32) -> (i32, i32, i32, i32) {
    %c1_i32 = arith.constant 1 : i32
    %0 = arith.muli %arg1, %c1_i32 : i32
    %1 = arith.addi %0, %arg2 : i32
    %c0_i32 = arith.constant 0 : i32
    %c0_i32_0 = arith.constant 0 : i32
    %c0_i32_1 = arith.constant 0 : i32
    return %arg0, %c0_i32, %1, %c0_i32_0 : i32, i32, i32, i32
  }
  func.func @transform_5(%arg0: i32, %arg1: i32, %arg2: i32) -> (i32, i32, i32, i32) {
    %c1_i32 = arith.constant 1 : i32
    %0 = arith.muli %arg1, %c1_i32 : i32
    %1 = arith.addi %0, %arg2 : i32
    %c0_i32 = arith.constant 0 : i32
    %c0_i32_0 = arith.constant 0 : i32
    %c0_i32_1 = arith.constant 0 : i32
    return %arg0, %c0_i32, %1, %c0_i32_0 : i32, i32, i32, i32
  }
  func.func @transform_6(%arg0: i32, %arg1: i32, %arg2: i32) -> (i32, i32, i32, i32) {
    %c1_i32 = arith.constant 1 : i32
    %0 = arith.muli %arg0, %c1_i32 : i32
    %1 = arith.addi %0, %arg1 : i32
    %c0_i32 = arith.constant 0 : i32
    %c0_i32_0 = arith.constant 0 : i32
    %c0_i32_1 = arith.constant 0 : i32
    %c0_i32_2 = arith.constant 0 : i32
    return %1, %c0_i32, %c0_i32_0, %c0_i32_1 : i32, i32, i32, i32
  }
}

</mosaic_0001>

<llo_original>
// kernel: _focal_loss_impl.1
$region0: #{_focal_loss_impl.1}
  #allocation0 [shape = 'u32[]', space=smem, size = 0x4, offset = 0x4, fixed_abs, tag = 'smem constant byte address 0x4 - core index']
  #allocation1 [shape = 'u32[144,128]{1,0:T(1,128)}', space=vmem, size = 0x12000, scoped, tag = 'internal scratch']
  %s0 = inlined_call_operand.vmem [shape: f32[24], index: 0, kind: input, shape index: {}]
  %s1 = inlined_call_operand.vmem [shape: s32[6], index: 1, kind: input, shape index: {}]
  %s2 = inlined_call_operand.vmem [shape: s32[2], index: 2, kind: input, shape index: {}]
  %s3 = inlined_call_operand.vmem [shape: f32[9,16,128], index: 3, kind: input, shape index: {}]
  %s4 = inlined_call_operand.vmem [shape: f32[2,4,16,128], index: 4, kind: input, shape index: {}]
  %s5 = inlined_call_operand.vmem [shape: f32[2,4,16,128], index: 5, kind: input, shape index: {}]
  %s6 = inlined_call_operand.vmem [shape: f32[2,3,8,128], index: 6, kind: output, shape index: {}]
  %s7 = sld [smem:[#allocation0]]
  $region73: #{_focal_loss_impl.1} parent=0
    _
  %s9 = ssub.s32 1, %s7
  %s10 = scalar_select 0, %s9, %s7
  $region1: #{_focal_loss_impl.1} parent=0
    #allocation2 [shape = 'u8[512]{0}', space=smem, size = 0x200, scoped, tag = 'input window, operand 0, single buffered']
    #allocation3 [shape = 's32[2]{0}', space=sflag, size = 0x8, scoped, tag = 'scoped memory for _focal_loss_impl.1']
    #allocation4 [shape = 'u8[512]{0}', space=smem, size = 0x200, scoped, tag = 'input window, operand 1, single buffered']
    #allocation5 [shape = 's32[1]{0}', space=sflag, size = 0x4, scoped, tag = 'scoped memory for _focal_loss_impl.1']
    #allocation6 [shape = 'u8[512]{0}', space=smem, size = 0x200, scoped, tag = 'input window, operand 2, single buffered']
    %11 = vsyncpa [#allocation3], 0
    %12 = vsyncpa [#allocation5], 0
    loop: start=0, step=1, limit=4
    $region2: #{_focal_loss_impl.1} parent=1 // loop_pre_header
      _
    $region3: #{_focal_loss_impl.1} parent=1 // loop_header
      %s14 = sphi 0, %s18
      %p15 = scmp.ge.s32.totalorder %s14, 4
      %s21 = sphi 0, %s40
      %s22 = sphi 0, %s36
      %s23 = sphi 0, %s32
      %s24 = sphi 0, %s21
      %s25 = sphi 0, %s22
      %s26 = sphi 0, %s23
      %s27 = sphi 0, %s24
      %s28 = sphi 0, %s25
      %s29 = sphi 0, %s26
      %s41 = sphi 0, %s41
      %s43 = sphi 0, %s41
      %s44 = sphi 0, %s43
      %s58 = sphi 0, %s44
      %s62 = sphi 0, %s62
      %s64 = sphi 0, %s62
      %s65 = sphi 0, %s64
      %s79 = sphi 0, %s65
      %s83 = sphi 0, %s83
      %s85 = sphi 0, %s83
      %s86 = sphi 0, %s85
      %s100 = sphi 0, %s86
      %s108 = sphi 0, %s110
      %s111 = sphi 0, %s108
      %s112 = sphi 0, %s111
      %s128 = sphi 0, %s112
      %s138 = sphi 0, %s140
      %s141 = sphi 0, %s138
      %s142 = sphi 0, %s141
      %s158 = sphi 0, %s142
      %s168 = sphi 0, %s170
      %s171 = sphi 0, %s168
      %s172 = sphi 0, %s171
      %s188 = sphi 0, %s172
      %s196 = sphi 0, %s198
      %s199 = sphi 0, %s196
      %s200 = sphi 0, %s199
      %s216 = sphi 0, %s200
    $region4: #{_focal_loss_impl.1} parent=1 // loop_header_branch
      %17 = sbr.rel (%p15) target = $region8
    $region5: #{_focal_loss_impl.1} parent=1 // loop_body
      %s19 = ssub.s32 %s14, 1
      %s20 = ssub.s32 %s14, 2
      %s30 = sadd.s32 1, %s23
      %p31 = scmp.ge.s32.totalorder %s30, 1
      %s32 = scalar_select %p31, 0, %s30
      %s33 = sadd.s32 1, %s22
      %s34 = scalar_select %p31, %s33, %s22
      %p35 = scmp.ge.s32.totalorder %s34, 1
      %s36 = scalar_select %p35, 0, %s34
      %s37 = sadd.s32 1, %s21
      %s38 = scalar_select %p35, %s37, %s21
      %p39 = scmp.ge.s32.totalorder %s38, 2
      %s40 = scalar_select %p39, 0, %s38
      %s42 = sadd.s32 %s41, 1
      %p45 = scmp.eq.s32.totalorder %s14, 1
      %p46 = scmp.ne.s32.totalorder %s41, %s43
      %p47 = scmp.eq.s32.totalorder %s14, 0
      %p48 = por %p46, %p47
      %p49 = scmp.ne.s32.totalorder %s41, %s43
      %p50 = scmp.eq.s32.totalorder %s19, 1
      %p51 = por %p49, %p50
      %p52 = scmp.ne.s32.totalorder %s43, %s44
      %p53 = scmp.eq.s32.totalorder %s19, 0
      %p54 = por %p52, %p53
      %p55 = scmp.ne.s32.totalorder %s43, %s44
      %p56 = scmp.eq.s32.totalorder %s20, 1
      %p57 = por %p55, %p56
      %p59 = scmp.ne.s32.totalorder %s44, %s58
      %p60 = scmp.eq.s32.totalorder %s20, 0
      %p61 = por %p59, %p60
      %s63 = sadd.s32 %s62, 1
      %p66 = scmp.eq.s32.totalorder %s14, 1
      %p67 = scmp.ne.s32.totalorder %s62, %s64
      %p68 = scmp.eq.s32.totalorder %s14, 0
      %p69 = por %p67, %p68
      %p70 = scmp.ne.s32.totalorder %s62, %s64
      %p71 = scmp.eq.s32.totalorder %s19, 1
      %p72 = por %p70, %p71
      %p73 = scmp.ne.s32.totalorder %s64, %s65
      %p74 = scmp.eq.s32.totalorder %s19, 0
      %p75 = por %p73, %p74
      %p76 = scmp.ne.s32.totalorder %s64, %s65
      %p77 = scmp.eq.s32.totalorder %s20, 1
      %p78 = por %p76, %p77
      %p80 = scmp.ne.s32.totalorder %s65, %s79
      %p81 = scmp.eq.s32.totalorder %s20, 0
      %p82 = por %p80, %p81
      %s84 = sadd.s32 %s83, 1
      %p87 = scmp.eq.s32.totalorder %s14, 1
      %p88 = scmp.ne.s32.totalorder %s83, %s85
      %p89 = scmp.eq.s32.totalorder %s14, 0
      %p90 = por %p88, %p89
      %p91 = scmp.ne.s32.totalorder %s83, %s85
      %p92 = scmp.eq.s32.totalorder %s19, 1
      %p93 = por %p91, %p92
      %p94 = scmp.ne.s32.totalorder %s85, %s86
      %p95 = scmp.eq.s32.totalorder %s19, 0
      %p96 = por %p94, %p95
      %p97 = scmp.ne.s32.totalorder %s85, %s86
      %p98 = scmp.eq.s32.totalorder %s20, 1
      %p99 = por %p97, %p98
      %p101 = scmp.ne.s32.totalorder %s86, %s100
      %p102 = scmp.eq.s32.totalorder %s20, 0
      %p103 = por %p101, %p102
      %s104 = sadd.s32 %s22, %s23
      %s105 = sadd.s32 %s36, %s32
      %s106 = ssub.s32 %s104, %s105
      %p107 = scmp.eq.s32.totalorder %s106, 0
      %s109 = sadd.s32 %s108, 1
      %s110 = scalar_select %p107, %s108, %s109
      %p113 = pneg %p107
      %p114 = scmp.eq.s32.totalorder %s14, 1
      %p115 = por %p113, %p114
      %p116 = scmp.ne.s32.totalorder %s108, %s111
      %p117 = scmp.eq.s32.totalorder %s14, 0
      %p118 = por %p116, %p117
      %p119 = scmp.ne.s32.totalorder %s108, %s111
      %p120 = scmp.eq.s32.totalorder %s19, 1
      %p121 = por %p119, %p120
      %p122 = scmp.ne.s32.totalorder %s111, %s112
      %p123 = scmp.eq.s32.totalorder %s19, 0
      %p124 = por %p122, %p123
      %p125 = scmp.ne.s32.totalorder %s111, %s112
      %p126 = scmp.eq.s32.totalorder %s20, 1
      %p127 = por %p125, %p126
      %p129 = scmp.ne.s32.totalorder %s112, %s128
      %p130 = scmp.eq.s32.totalorder %s20, 0
      %p131 = por %p129, %p130
      %s132 = sadd.s32 %s22, %s23
      %s133 = sadd.s32 %s36, %s32
      %s134 = ssub.s32 %s21, %s40
      %s135 = ssub.s32 %s132, %s133
      %s136 = sor.u32 %s134, %s135
      %p137 = scmp.eq.s32.totalorder %s136, 0
      %s139 = sadd.s32 %s138, 1
      %s140 = scalar_select %p137, %s138, %s139
      %p143 = pneg %p137
      %p144 = scmp.eq.s32.totalorder %s14, 1
      %p145 = por %p143, %p144
      %p146 = scmp.ne.s32.totalorder %s138, %s141
      %p147 = scmp.eq.s32.totalorder %s14, 0
      %p148 = por %p146, %p147
      %p149 = scmp.ne.s32.totalorder %s138, %s141
      %p150 = scmp.eq.s32.totalorder %s19, 1
      %p151 = por %p149, %p150
      %p152 = scmp.ne.s32.totalorder %s141, %s142
      %p153 = scmp.eq.s32.totalorder %s19, 0
      %p154 = por %p152, %p153
      %p155 = scmp.ne.s32.totalorder %s141, %s142
      %p156 = scmp.eq.s32.totalorder %s20, 1
      %p157 = por %p155, %p156
      %p159 = scmp.ne.s32.totalorder %s142, %s158
      %p160 = scmp.eq.s32.totalorder %s20, 0
      %p161 = por %p159, %p160
      %s162 = sadd.s32 %s22, %s23
      %s163 = sadd.s32 %s36, %s32
      %s164 = ssub.s32 %s21, %s40
      %s165 = ssub.s32 %s162, %s163
      %s166 = sor.u32 %s164, %s165
      %p167 = scmp.eq.s32.totalorder %s166, 0
      %s169 = sadd.s32 %s168, 1
      %s170 = scalar_select %p167, %s168, %s169
      %p173 = pneg %p167
      %p174 = scmp.eq.s32.totalorder %s14, 1
      %p175 = por %p173, %p174
      %p176 = scmp.ne.s32.totalorder %s168, %s171
      %p177 = scmp.eq.s32.totalorder %s14, 0
      %p178 = por %p176, %p177
      %p179 = scmp.ne.s32.totalorder %s168, %s171
      %p180 = scmp.eq.s32.totalorder %s19, 1
      %p181 = por %p179, %p180
      %p182 = scmp.ne.s32.totalorder %s171, %s172
      %p183 = scmp.eq.s32.totalorder %s19, 0
      %p184 = por %p182, %p183
      %p185 = scmp.ne.s32.totalorder %s171, %s172
      %p186 = scmp.eq.s32.totalorder %s20, 1
      %p187 = por %p185, %p186
      %p189 = scmp.ne.s32.totalorder %s172, %s188
      %p190 = scmp.eq.s32.totalorder %s20, 0
      %p191 = por %p189, %p190
      %s192 = sadd.s32 %s21, %s22
      %s193 = sadd.s32 %s40, %s36
      %s194 = ssub.s32 %s192, %s193
      %p195 = scmp.eq.s32.totalorder %s194, 0
      %s197 = sadd.s32 %s196, 1
      %s198 = scalar_select %p195, %s196, %s197
      %p201 = pneg %p195
      %p202 = scmp.eq.s32.totalorder %s14, 1
      %p203 = por %p201, %p202
      %p204 = scmp.ne.s32.totalorder %s196, %s199
      %p205 = scmp.eq.s32.totalorder %s14, 0
      %p206 = por %p204, %p205
      %p207 = scmp.ne.s32.totalorder %s196, %s199
      %p208 = scmp.eq.s32.totalorder %s19, 1
      %p209 = por %p207, %p208
      %p210 = scmp.ne.s32.totalorder %s199, %s200
      %p211 = scmp.eq.s32.totalorder %s19, 0
      %p212 = por %p210, %p211
      %p213 = scmp.ne.s32.totalorder %s199, %s200
      %p214 = scmp.eq.s32.totalorder %s20, 1
      %p215 = por %p213, %p214
      %p217 = scmp.ne.s32.totalorder %s200, %s216
      %p218 = scmp.eq.s32.totalorder %s20, 0
      %p219 = por %p217, %p218
      %p220 = scmp.le.s32.totalorder 1, %s14
      %p221 = scmp.lt.s32.totalorder %s14, 3
      %p222 = pnand %p220, %p221
      %p223 = pneg %p222
      // Predicated region
      $region9: #{_focal_loss_impl.1} parent=5 // pred_check
        _
      $region10: #{_focal_loss_impl.1} parent=5 // pred_check_branch
        %225 = sbr.rel (%p222) target = $region12
      $region11: #{_focal_loss_impl.1} parent=5 // pred_region
        %s226 = ssub.s32 %s14, 1
        // Predicated region
        $region13: #{_focal_loss_impl.1} parent=11 // pred_check
          %p227 = pneg %p54
        $region14: #{_focal_loss_impl.1} parent=11 // pred_check_branch
          %229 = sbr.rel (%p227) target = $region16
        $region15: #{_focal_loss_impl.1} parent=11 // pred_region
          %s231 = ssub.s32 16, 16
          %232 = vsyncadd [#allocation3], %s231
          %s234 = sshll.u32 %s0, 4
          %s235 = int_to_ptr.vmem [resolvable:$true] %s234
          %237 = dma.vmem_to_smem %s235, 16, [#allocation2], [#allocation3]
        $region16: #{_focal_loss_impl.1} parent=11 // pred_fallthru
          _
        // Predicated region
        $region17: #{_focal_loss_impl.1} parent=11 // pred_check
          %p238 = pneg %p75
        $region18: #{_focal_loss_impl.1} parent=11 // pred_check_branch
          %240 = sbr.rel (%p238) target = $region20
        $region19: #{_focal_loss_impl.1} parent=11 // pred_region
          %s242 = ssub.s32 16, 16
          %243 = vsyncadd [#allocation5], %s242
          %s245 = sshll.u32 %s1, 4
          %s246 = int_to_ptr.vmem [resolvable:$true] %s245
          %248 = dma.vmem_to_smem %s246, 16, [#allocation4], [#allocation5]
        $region20: #{_focal_loss_impl.1} parent=11 // pred_fallthru
          _
        // Predicated region
        $region21: #{_focal_loss_impl.1} parent=11 // pred_check
          %p249 = pneg %p96
        $region22: #{_focal_loss_impl.1} parent=11 // pred_check_branch
          %251 = sbr.rel (%p249) target = $region24
        $region23: #{_focal_loss_impl.1} parent=11 // pred_region
          %s253 = ssub.s32 16, 16
          %254 = vsyncadd [#allocation5], %s253
          %s256 = sshll.u32 %s2, 4
          %s257 = int_to_ptr.vmem [resolvable:$true] %s256
          %259 = dma.vmem_to_smem %s257, 16, [#allocation6], [#allocation5]
        $region24: #{_focal_loss_impl.1} parent=11 // pred_fallthru
          _
        // Predicated region
        $region25: #{_focal_loss_impl.1} parent=11 // pred_check
          %p260 = pneg %p124
        $region26: #{_focal_loss_impl.1} parent=11 // pred_check_branch
          %262 = sbr.rel (%p260) target = $region28
        $region27: #{_focal_loss_impl.1} parent=11 // pred_region
          %s263 = sadd.s32 %s25, %s26
          %s264 = smul.u32 2, %s263
          %p265 = scmp.lt.s32.totalorder %s264, 1
          %s266 = scalar_select %p265, %s264, 1
          %s267 = smul.addr %s266, 8
          %s268 = scalar_lea.vmem %s3, %s267
          %s269 = sadd.s32 %s25, %s26
          %s270 = smul.u32 2, %s269
        $region28: #{_focal_loss_impl.1} parent=11 // pred_fallthru
          _
      $region12: #{_focal_loss_impl.1} parent=5 // pred_fallthru
        _
      %p271 = scmp.lt.s32.totalorder %s14, 2
      // Predicated region
      $region29: #{_focal_loss_impl.1} parent=5 // pred_check
        %p272 = pneg %p271
      $region30: #{_focal_loss_impl.1} parent=5 // pred_check_branch
        %274 = sbr.rel (%p272) target = $region32
      $region31: #{_focal_loss_impl.1} parent=5 // pred_region
        // Predicated region
        $region33: #{_focal_loss_impl.1} parent=31 // pred_check
          %p275 = pneg %p148
        $region34: #{_focal_loss_impl.1} parent=31 // pred_check_branch
          %277 = sbr.rel (%p275) target = $region36
        $region35: #{_focal_loss_impl.1} parent=31 // pred_region
          %s278 = sadd.s32 %s22, %s23
          %s279 = smul.u32 2, %s278
          %p280 = scmp.lt.s32.totalorder %s21, 1
          %s281 = scalar_select %p280, %s21, 1
          %p282 = scmp.lt.s32.totalorder %s279, 1
          %s283 = scalar_select %p282, %s279, 1
          %s284 = smul.addr %s281, 8
          %s285 = sadd.s32 %s283, %s284
          %s286 = smul.addr %s285, 8
          %s287 = scalar_lea.vmem %s4, %s286
          %s288 = sadd.s32 %s22, %s23
          %s289 = smul.u32 2, %s288
        $region36: #{_focal_loss_impl.1} parent=31 // pred_fallthru
          _
        // Predicated region
        $region37: #{_focal_loss_impl.1} parent=31 // pred_check
          %p290 = pneg %p178
        $region38: #{_focal_loss_impl.1} parent=31 // pred_check_branch
          %292 = sbr.rel (%p290) target = $region40
        $region39: #{_focal_loss_impl.1} parent=31 // pred_region
          %s293 = sadd.s32 %s22, %s23
          %s294 = smul.u32 2, %s293
          %p295 = scmp.lt.s32.totalorder %s21, 1
          %s296 = scalar_select %p295, %s21, 1
          %p297 = scmp.lt.s32.totalorder %s294, 1
          %s298 = scalar_select %p297, %s294, 1
          %s299 = smul.addr %s296, 8
          %s300 = sadd.s32 %s298, %s299
          %s301 = smul.addr %s300, 8
          %s302 = scalar_lea.vmem %s5, %s301
          %s303 = sadd.s32 %s22, %s23
          %s304 = smul.u32 2, %s303
        $region40: #{_focal_loss_impl.1} parent=31 // pred_fallthru
          _
      $region32: #{_focal_loss_impl.1} parent=5 // pred_fallthru
        _
      %p305 = scmp.le.s32.totalorder 1, %s14
      %p306 = scmp.lt.s32.totalorder %s14, 3
      %p307 = pnand %p305, %p306
      %p308 = pneg %p307
      // Predicated region
      $region41: #{_focal_loss_impl.1} parent=5 // pred_check
        _
      $region42: #{_focal_loss_impl.1} parent=5 // pred_check_branch
        %310 = sbr.rel (%p307) target = $region44
      $region43: #{_focal_loss_impl.1} parent=5 // pred_region
        %s311 = ssub.s32 %s14, 1
        // Predicated region
        $region45: #{_focal_loss_impl.1} parent=43 // pred_check
          %p312 = pneg %p54
        $region46: #{_focal_loss_impl.1} parent=43 // pred_check_branch
          %314 = sbr.rel (%p312) target = $region48
        $region47: #{_focal_loss_impl.1} parent=43 // pred_region
          %315 = dma.done [#allocation3], 16
        $region48: #{_focal_loss_impl.1} parent=43 // pred_fallthru
          _
        // Predicated region
        $region49: #{_focal_loss_impl.1} parent=43 // pred_check
          %p316 = pneg %p75
        $region50: #{_focal_loss_impl.1} parent=43 // pred_check_branch
          %318 = sbr.rel (%p316) target = $region52
        $region51: #{_focal_loss_impl.1} parent=43 // pred_region
          %319 = dma.done [#allocation5], 16
        $region52: #{_focal_loss_impl.1} parent=43 // pred_fallthru
          _
        // Predicated region
        $region53: #{_focal_loss_impl.1} parent=43 // pred_check
          %p320 = pneg %p96
        $region54: #{_focal_loss_impl.1} parent=43 // pred_check_branch
          %322 = sbr.rel (%p320) target = $region56
        $region55: #{_focal_loss_impl.1} parent=43 // pred_region
          %323 = dma.done [#allocation5], 16
        $region56: #{_focal_loss_impl.1} parent=43 // pred_fallthru
          _
        %324 = sfence
        %p325 = pneg %p54
        %p326 = pneg %p51
        %p327 = pneg %p75
        %p328 = pneg %p72
        %p329 = pneg %p96
        %p330 = pneg %p93
        %s331 = sadd.s32 %s25, %s26
        %s332 = smul.u32 2, %s331
        %p333 = scmp.lt.s32.totalorder %s332, 1
        %s334 = scalar_select %p333, %s332, 1
        %s335 = smul.addr %s334, 8
        %s336 = scalar_lea.vmem %s3, %s335
        %p337 = pneg %p124
        %p338 = pneg %p121
        %s339 = sadd.s32 %s25, %s26
        %s340 = smul.u32 2, %s339
        %p341 = scmp.lt.s32.totalorder %s24, 1
        %s342 = scalar_select %p341, %s24, 1
        %p343 = scmp.lt.s32.totalorder %s340, 1
        %s344 = scalar_select %p343, %s340, 1
        %s345 = smul.addr %s342, 8
        %s346 = sadd.s32 %s344, %s345
        %s347 = smul.addr %s346, 8
        %s348 = scalar_lea.vmem %s4, %s347
        %p349 = pneg %p154
        %p350 = pneg %p151
        %s351 = sadd.s32 %s25, %s26
        %s352 = smul.u32 2, %s351
        %p353 = scmp.lt.s32.totalorder %s24, 1
        %s354 = scalar_select %p353, %s24, 1
        %p355 = scmp.lt.s32.totalorder %s352, 1
        %s356 = scalar_select %p355, %s352, 1
        %s357 = smul.addr %s354, 8
        %s358 = sadd.s32 %s356, %s357
        %s359 = smul.addr %s358, 8
        %s360 = scalar_lea.vmem %s5, %s359
        %p361 = pneg %p184
        %p362 = pneg %p181
        %p363 = pneg %p212
        %p364 = pneg %p209
        %s365 = sadd.s32 %s24, %s25
        %p366 = scmp.lt.s32.totalorder %s365, 1
        %s367 = scalar_select %p366, %s365, 1
        %s368 = smul.addr %s367, 3
        %s369 = smul.addr %s368, 8
        %s370 = scalar_lea.vmem %s6, %s369
        %s371 = sadd.s32 %s25, %s26
        %s372 = smul.u32 2, %s371
        %p373 = scmp.lt.s32.totalorder %s372, 1
        %s374 = scalar_select %p373, %s372, 1
        %s375 = smul.addr %s374, 8
        %s376 = scalar_lea.vmem %s3, %s375
        %s377 = sadd.s32 %s25, %s26
        %s378 = smul.u32 2, %s377
        %s379 = sadd.s32 %s25, %s26
        %s380 = smul.u32 2, %s379
        %p381 = scmp.lt.s32.totalorder %s24, 1
        %s382 = scalar_select %p381, %s24, 1
        %p383 = scmp.lt.s32.totalorder %s380, 1
        %s384 = scalar_select %p383, %s380, 1
        %s385 = smul.addr %s382, 8
        %s386 = sadd.s32 %s384, %s385
        %s387 = smul.addr %s386, 8
        %s388 = scalar_lea.vmem %s4, %s387
        %s389 = sadd.s32 %s25, %s26
        %s390 = smul.u32 2, %s389
        %s391 = sadd.s32 %s25, %s26
        %s392 = smul.u32 2, %s391
        %p393 = scmp.lt.s32.totalorder %s24, 1
        %s394 = scalar_select %p393, %s24, 1
        %p395 = scmp.lt.s32.totalorder %s392, 1
        %s396 = scalar_select %p395, %s392, 1
        %s397 = smul.addr %s394, 8
        %s398 = sadd.s32 %s396, %s397
        %s399 = smul.addr %s398, 8
        %s400 = scalar_lea.vmem %s5, %s399
        %s401 = sadd.s32 %s25, %s26
        %s402 = smul.u32 2, %s401
        %s403 = sadd.s32 %s24, %s25
        %p404 = scmp.lt.s32.totalorder %s403, 1
        %s405 = scalar_select %p404, %s403, 1
        %s406 = smul.addr %s405, 3
        %s407 = smul.addr %s406, 8
        %s408 = scalar_lea.vmem %s6, %s407
        %s409 = sadd.s32 %s24, %s25
        %p410 = scmp.eq.s32.totalorder %s26, 0
        // Predicated region
        $region57: #{_focal_loss_impl.1} parent=43 // pred_check
          %p411 = pneg %p410
        $region58: #{_focal_loss_impl.1} parent=43 // pred_check_branch
          %413 = sbr.rel (%p411) target = $region60
        $region59: #{_focal_loss_impl.1} parent=43 // pred_region
          %414 = vst [vmem:[%s408] sm:$0xff] 0.0
          %415 = vst [vmem:[%s408 + $0x8] sm:$0xff] 0.0
          %416 = vst [vmem:[%s408 + $0x10] sm:$0xff] 0.0
        $region60: #{_focal_loss_impl.1} parent=43 // pred_fallthru
          _
        %s417 = sld [smem:[#allocation6 + %s24]]
        %v418 = vld [vmem:[%s376] sm:$0xff]
        %s419 = scalar_lea.vmem %s376, 16
        %v420 = vld [vmem:[%s419] sm:$0xff]
        %s421 = scalar_lea.vmem %s376, 32
        %v422 = vld [vmem:[%s421] sm:$0xff]
        %s423 = scalar_lea.vmem %s376, 48
        %v424 = vld [vmem:[%s423] sm:$0xff]
        %s425 = scalar_lea.vmem %s376, 64
        %v426 = vld [vmem:[%s425] sm:$0xff]
        %s427 = scalar_lea.vmem %s376, 80
        %v428 = vld [vmem:[%s427] sm:$0xff]
        %s429 = scalar_lea.vmem %s376, 96
        %v430 = vld [vmem:[%s429] sm:$0xff]
        %s431 = scalar_lea.vmem %s376, 112
        %v432 = vld [vmem:[%s431] sm:$0xff]
        %s433 = scalar_lea.vmem %s376, 128
        %v434 = vld [vmem:[%s433] sm:$0xff]
        %s435 = smul.u32 %s24, 12
        %s436 = sld [smem:[#allocation2 + %s435]]
        %s437 = sadd.s32 %s435, 1
        %s438 = sld [smem:[#allocation2 + %s437]]
        %s439 = sadd.s32 %s435, 2
        %s440 = sld [smem:[#allocation2 + %s439]]
        %s441 = sadd.s32 %s435, 3
        %s442 = sld [smem:[#allocation2 + %s441]]
        %s443 = smul.u32 %s24, 3
        %s444 = sld [smem:[#allocation4 + %s443]]
        %s445 = ssub.f32 %s440, %s436
        %s446 = ssub.f32 %s442, %s438
        %s447 = smul.f32 %s445, %s446
        %v448 = vstv %s440
        %v449 = vmin.f32 %v422, %v448
        %v450 = vstv %s436
        %v451 = vmax.f32 %v418, %v450
        %v452 = vsub.f32 %v449, %v451
        %v453 = vmax.f32 %v452, 0.0
        %v454 = vstv %s442
        %v455 = vmin.f32 %v424, %v454
        %v456 = vstv %s438
        %v457 = vmax.f32 %v420, %v456
        %v458 = vsub.f32 %v455, %v457
        %v459 = vmax.f32 %v458, 0.0
        %v460 = vmul.f32 %v453, %v459
        %v461 = vstv %s447
        %v462 = vadd.f32 %v426, %v461
        %v463 = vsub.f32 %v462, %v460
        %v464 = vmul.f32 %v463, -1.0
        %vm465 = vcmp.gt.f32.partialorder %v460, %v464
        %p466 = scmp.gt.s32.totalorder %s417, 0
        %s467 = scalar_select %p466, 1, 0
        %v468 = vstv %s467
        %vm469 = vcmp.eq.s32.totalorder %v468, 1
        %vm470 = vmand %vm465, %vm469
        %v471 = vsel %vm470, %v460, -1.0
        %v472 = vsel %vm470, %v463, 1.0
        %v473 = vstv %s444
        %v474 = vsel %vm470, %v473, 0
        %v475 = vsel %vm470, %v450, 0.0
        %v476 = vsel %vm470, %v456, 0.0
        %v477 = vsel %vm470, %v448, 0.0
        %v478 = vsel %vm470, %v454, 0.0
        %s479 = sadd.s32 %s443, 1
        %s480 = smul.u32 %s479, 4
        %s481 = sld [smem:[#allocation2 + %s480]]
        %s482 = sadd.s32 %s480, 1
        %s483 = sld [smem:[#allocation2 + %s482]]
        %s484 = sadd.s32 %s480, 2
        %s485 = sld [smem:[#allocation2 + %s484]]
        %s486 = sadd.s32 %s480, 3
        %s487 = sld [smem:[#allocation2 + %s486]]
        %s488 = sld [smem:[#allocation4 + %s479]]
        %s489 = ssub.f32 %s485, %s481
        %s490 = ssub.f32 %s487, %s483
        %s491 = smul.f32 %s489, %s490
        %v492 = vstv %s485
        %v493 = vmin.f32 %v422, %v492
        %v494 = vstv %s481
        %v495 = vmax.f32 %v418, %v494
        %v496 = vsub.f32 %v493, %v495
        %v497 = vmax.f32 %v496, 0.0
        %v498 = vstv %s487
        %v499 = vmin.f32 %v424, %v498
        %v500 = vstv %s483
        %v501 = vmax.f32 %v420, %v500
        %v502 = vsub.f32 %v499, %v501
        %v503 = vmax.f32 %v502, 0.0
        %v504 = vmul.f32 %v497, %v503
        %v505 = vstv %s491
        %v506 = vadd.f32 %v426, %v505
        %v507 = vsub.f32 %v506, %v504
        %v508 = vmul.f32 %v504, %v472
        %v509 = vmul.f32 %v471, %v507
        %vm510 = vcmp.gt.f32.partialorder %v508, %v509
        %p511 = scmp.gt.s32.totalorder %s417, 1
        %s512 = scalar_select %p511, 1, 0
        %v513 = vstv %s512
        %vm514 = vcmp.eq.s32.totalorder %v513, 1
        %vm515 = vmand %vm510, %vm514
        %v516 = vsel %vm515, %v504, %v471
        %v517 = vsel %vm515, %v507, %v472
        %v518 = vstv %s488
        %v519 = vsel %vm515, %v518, %v474
        %v520 = vsel %vm515, %v494, %v475
        %v521 = vsel %vm515, %v500, %v476
        %v522 = vsel %vm515, %v492, %v477
        %v523 = vsel %vm515, %v498, %v478
        %s524 = sadd.s32 %s443, 2
        %s525 = smul.u32 %s524, 4
        %s526 = sld [smem:[#allocation2 + %s525]]
        %s527 = sadd.s32 %s525, 1
        %s528 = sld [smem:[#allocation2 + %s527]]
        %s529 = sadd.s32 %s525, 2
        %s530 = sld [smem:[#allocation2 + %s529]]
        %s531 = sadd.s32 %s525, 3
        %s532 = sld [smem:[#allocation2 + %s531]]
        %s533 = sld [smem:[#allocation4 + %s524]]
        %s534 = ssub.f32 %s530, %s526
        %s535 = ssub.f32 %s532, %s528
        %s536 = smul.f32 %s534, %s535
        %v537 = vstv %s530
        %v538 = vmin.f32 %v422, %v537
        %v539 = vstv %s526
        %v540 = vmax.f32 %v418, %v539
        %v541 = vsub.f32 %v538, %v540
        %v542 = vmax.f32 %v541, 0.0
        %v543 = vstv %s532
        %v544 = vmin.f32 %v424, %v543
        %v545 = vstv %s528
        %v546 = vmax.f32 %v420, %v545
        %v547 = vsub.f32 %v544, %v546
        %v548 = vmax.f32 %v547, 0.0
        %v549 = vmul.f32 %v542, %v548
        %v550 = vstv %s536
        %v551 = vadd.f32 %v426, %v550
        %v552 = vsub.f32 %v551, %v549
        %v553 = vmul.f32 %v549, %v517
        %v554 = vmul.f32 %v516, %v552
        %vm555 = vcmp.gt.f32.partialorder %v553, %v554
        %p556 = scmp.gt.s32.totalorder %s417, 2
        %s557 = scalar_select %p556, 1, 0
        %v558 = vstv %s557
        %vm559 = vcmp.eq.s32.totalorder %v558, 1
        %vm560 = vmand %vm555, %vm559
        %v561 = vsel %vm560, %v549, %v516
        %v562 = vsel %vm560, %v552, %v517
        %v563 = vstv %s533
        %v564 = vsel %vm560, %v563, %v519
        %v565 = vsel %vm560, %v539, %v520
        %v566 = vsel %vm560, %v545, %v521
        %v567 = vsel %vm560, %v537, %v522
        %v568 = vsel %vm560, %v543, %v523
        %v569 = vrcp.pop %v562
        %v570 = vmul.f32 %v561, %v569
        %vm571 = vcmp.ge.f32.partialorder %v570, 0.5
        %vm572 = vcmp.ge.f32.partialorder %v570, 0.4
        %vm573 = vcmp.lt.f32.partialorder %v570, 0.5
        %vm574 = vmand %vm572, %vm573
        %v575 = vld [vmem:[%s388] sm:$0xff]
        %v576 = vld [vmem:[%s388 + $0x10] sm:$0xff]
        %v577 = vld [vmem:[%s388 + $0x20] sm:$0xff]
        %v578 = vld [vmem:[%s388 + $0x30] sm:$0xff]
        %vm579 = vcmp.eq.s32.totalorder %v564, 0
        %vm580 = vcmp.eq.s32.totalorder %v564, 1
        %vm581 = vcmp.eq.s32.totalorder %v564, 2
        %vm582 = vcmp.eq.s32.totalorder %v564, 3
        %v583 = vsel %vm571, 1, 0
        %vm584 = vcmp.eq.s32.totalorder %v583, 1
        %vm585 = vmand %vm579, %vm584
        %vm586 = vmand %vm580, %vm584
        %vm587 = vmand %vm581, %vm584
        %vm588 = vmand %vm582, %vm584
        %v589 = vsel %vm574, 1, 0
        %vm590 = vcmp.eq.s32.totalorder %v589, 1
        %vm591 = vmand %vm579, %vm590
        %vm592 = vmand %vm580, %vm590
        %vm593 = vmand %vm581, %vm590
        %vm594 = vmand %vm582, %vm590
        %v595 = vsub.f32 1.0, %v575
        %v596 = vsub.f32 1.0, %v576
        %v597 = vsub.f32 1.0, %v577
        %v598 = vsub.f32 1.0, %v578
        %v599 = vsel %vm585, %v575, %v595
        %v600 = vsel %vm586, %v576, %v596
        %v601 = vsel %vm587, %v577, %v597
        %v602 = vsel %vm588, %v578, %v598
        %v603 = vsel %vm585, 0.25, 0.75
        %v604 = vsel %vm586, 0.25, 0.75
        %v605 = vsel %vm587, 0.25, 0.75
        %v606 = vsel %vm588, 0.25, 0.75
        %v607 = vsub.f32 1.0, %v599
        %v608 = vsub.f32 1.0, %v600
        %v609 = vsub.f32 1.0, %v601
        %v610 = vsub.f32 1.0, %v602
        %v611 = vmul.f32 %v607, %v607
        %v612 = vmul.f32 %v608, %v608
        %v613 = vmul.f32 %v609, %v609
        %v614 = vmul.f32 %v610, %v610
        %v615 = vmul.f32 %v603, %v611
        %v616 = vmul.f32 %v604, %v612
        %v617 = vmul.f32 %v605, %v613
        %v618 = vmul.f32 %v606, %v614
        %v619 = vlog2.pop %v599
        %v620 = vmul.f32 %v619, 0.6931472
        %v621 = vlog2.pop %v600
        %v622 = vmul.f32 %v621, 0.6931472
        %v623 = vlog2.pop %v601
        %v624 = vmul.f32 %v623, 0.6931472
        %v625 = vlog2.pop %v602
        %v626 = vmul.f32 %v625, 0.6931472
        %v627 = vsub.f32 0.0, %v620
        %v628 = vsub.f32 0.0, %v622
        %v629 = vsub.f32 0.0, %v624
        %v630 = vsub.f32 0.0, %v626
        %v631 = vmin.f32 %v627, 100.0
        %v632 = vmin.f32 %v628, 100.0
        %v633 = vmin.f32 %v629, 100.0
        %v634 = vmin.f32 %v630, 100.0
        %v635 = vmul.f32 %v615, %v631
        %v636 = vmul.f32 %v616, %v632
        %v637 = vmul.f32 %v617, %v633
        %v638 = vmul.f32 %v618, %v634
        %v639 = vsel %vm591, 0.0, %v635
        %v640 = vsel %vm592, 0.0, %v636
        %v641 = vsel %vm593, 0.0, %v637
        %v642 = vsel %vm594, 0.0, %v638
        %v643 = vadd.f32 %v639, %v640
        %v644 = vadd.f32 %v643, %v641
        %v645 = vadd.f32 %v644, %v642
        %v646 = vadd.f32 %v645, 0.0
        %v647 = vsub.f32 %v567, %v565
        %v648 = vsub.f32 %v568, %v566
        %v649 = vmul.f32 %v647, 0.5
        %v650 = vadd.f32 %v565, %v649
        %v651 = vmul.f32 %v648, 0.5
        %v652 = vadd.f32 %v566, %v651
        %v653 = vsub.f32 %v650, %v428
        %v654 = vmul.f32 %v653, %v432
        %v655 = vsub.f32 %v652, %v430
        %v656 = vmul.f32 %v655, %v434
        %v657 = vmul.f32 %v647, %v432
        %v658 = vsel %vm571, %v657, 1.0
        %v659 = vlog2.pop %v658
        %v660 = vmul.f32 %v659, 0.6931472
        %v661 = vmul.f32 %v648, %v434
        %v662 = vsel %vm571, %v661, 1.0
        %v663 = vlog2.pop %v662
        %v664 = vmul.f32 %v663, 0.6931472
        %v665 = vld [vmem:[%s400] sm:$0xff]
        %v666 = vld [vmem:[%s400 + $0x10] sm:$0xff]
        %v667 = vld [vmem:[%s400 + $0x20] sm:$0xff]
        %v668 = vld [vmem:[%s400 + $0x30] sm:$0xff]
        %v669 = vsub.f32 %v665, %v654
        %v670 = vand.u32 2147483647, %v669
        %vm671 = vcmp.lt.f32.partialorder %v670, 0.11111111
        %v672 = vmul.f32 %v669, 4.5
        %v673 = vmul.f32 %v672, %v669
        %v674 = vsub.f32 %v670, 0.055555556
        %v675 = vsel %vm671, %v673, %v674
        %v676 = vsub.f32 %v666, %v656
        %v677 = vand.u32 2147483647, %v676
        %vm678 = vcmp.lt.f32.partialorder %v677, 0.11111111
        %v679 = vmul.f32 %v676, 4.5
        %v680 = vmul.f32 %v679, %v676
        %v681 = vsub.f32 %v677, 0.055555556
        %v682 = vsel %vm678, %v680, %v681
        %v683 = vadd.f32 %v675, %v682
        %v684 = vsub.f32 %v667, %v660
        %v685 = vand.u32 2147483647, %v684
        %vm686 = vcmp.lt.f32.partialorder %v685, 0.11111111
        %v687 = vmul.f32 %v684, 4.5
        %v688 = vmul.f32 %v687, %v684
        %v689 = vsub.f32 %v685, 0.055555556
        %v690 = vsel %vm686, %v688, %v689
        %v691 = vadd.f32 %v683, %v690
        %v692 = vsub.f32 %v668, %v664
        %v693 = vand.u32 2147483647, %v692
        %vm694 = vcmp.lt.f32.partialorder %v693, 0.11111111
        %v695 = vmul.f32 %v692, 4.5
        %v696 = vmul.f32 %v695, %v692
        %v697 = vsub.f32 %v693, 0.055555556
        %v698 = vsel %vm694, %v696, %v697
        %v699 = vadd.f32 %v691, %v698
        %v700 = vsel %vm571, %v699, 0.0
        %v701 = vadd.f32 %v700, 0.0
        %v702 = vcvt.s32.f32 %v583
        %v703 = vadd.f32 %v702, 0.0
        %v704 = vld [vmem:[%s376 + $0x8] sm:$0xff]
        %v705 = vld [vmem:[%s419 + $0x8] sm:$0xff]
        %v706 = vld [vmem:[%s421 + $0x8] sm:$0xff]
        %v707 = vld [vmem:[%s423 + $0x8] sm:$0xff]
        %v708 = vld [vmem:[%s425 + $0x8] sm:$0xff]
        %v709 = vld [vmem:[%s427 + $0x8] sm:$0xff]
        %v710 = vld [vmem:[%s429 + $0x8] sm:$0xff]
        %v711 = vld [vmem:[%s431 + $0x8] sm:$0xff]
        %v712 = vld [vmem:[%s433 + $0x8] sm:$0xff]
        %v713 = vmin.f32 %v706, %v448
        %v714 = vmax.f32 %v704, %v450
        %v715 = vsub.f32 %v713, %v714
        %v716 = vmax.f32 %v715, 0.0
        %v717 = vmin.f32 %v707, %v454
        %v718 = vmax.f32 %v705, %v456
        %v719 = vsub.f32 %v717, %v718
        %v720 = vmax.f32 %v719, 0.0
        %v721 = vmul.f32 %v716, %v720
        %v722 = vadd.f32 %v708, %v461
        %v723 = vsub.f32 %v722, %v721
        %v724 = vmul.f32 %v723, -1.0
        %vm725 = vcmp.gt.f32.partialorder %v721, %v724
        %vm726 = vmand %vm725, %vm469
        %v727 = vsel %vm726, %v721, -1.0
        %v728 = vsel %vm726, %v723, 1.0
        %v729 = vsel %vm726, %v473, 0
        %v730 = vsel %vm726, %v450, 0.0
        %v731 = vsel %vm726, %v456, 0.0
        %v732 = vsel %vm726, %v448, 0.0
        %v733 = vsel %vm726, %v454, 0.0
        %v734 = vmin.f32 %v706, %v492
        %v735 = vmax.f32 %v704, %v494
        %v736 = vsub.f32 %v734, %v735
        %v737 = vmax.f32 %v736, 0.0
        %v738 = vmin.f32 %v707, %v498
        %v739 = vmax.f32 %v705, %v500
        %v740 = vsub.f32 %v738, %v739
        %v741 = vmax.f32 %v740, 0.0
        %v742 = vmul.f32 %v737, %v741
        %v743 = vadd.f32 %v708, %v505
        %v744 = vsub.f32 %v743, %v742
        %v745 = vmul.f32 %v742, %v728
        %v746 = vmul.f32 %v727, %v744
        %vm747 = vcmp.gt.f32.partialorder %v745, %v746
        %vm748 = vmand %vm747, %vm514
        %v749 = vsel %vm748, %v742, %v727
        %v750 = vsel %vm748, %v744, %v728
        %v751 = vsel %vm748, %v518, %v729
        %v752 = vsel %vm748, %v494, %v730
        %v753 = vsel %vm748, %v500, %v731
        %v754 = vsel %vm748, %v492, %v732
        %v755 = vsel %vm748, %v498, %v733
        %v756 = vmin.f32 %v706, %v537
        %v757 = vmax.f32 %v704, %v539
        %v758 = vsub.f32 %v756, %v757
        %v759 = vmax.f32 %v758, 0.0
        %v760 = vmin.f32 %v707, %v543
        %v761 = vmax.f32 %v705, %v545
        %v762 = vsub.f32 %v760, %v761
        %v763 = vmax.f32 %v762, 0.0
        %v764 = vmul.f32 %v759, %v763
        %v765 = vadd.f32 %v708, %v550
        %v766 = vsub.f32 %v765, %v764
        %v767 = vmul.f32 %v764, %v750
        %v768 = vmul.f32 %v749, %v766
        %vm769 = vcmp.gt.f32.partialorder %v767, %v768
        %vm770 = vmand %vm769, %vm559
        %v771 = vsel %vm770, %v764, %v749
        %v772 = vsel %vm770, %v766, %v750
        %v773 = vsel %vm770, %v563, %v751
        %v774 = vsel %vm770, %v539, %v752
        %v775 = vsel %vm770, %v545, %v753
        %v776 = vsel %vm770, %v537, %v754
        %v777 = vsel %vm770, %v543, %v755
        %v778 = vrcp.pop %v772
        %v779 = vmul.f32 %v771, %v778
        %vm780 = vcmp.ge.f32.partialorder %v779, 0.5
        %vm781 = vcmp.ge.f32.partialorder %v779, 0.4
        %vm782 = vcmp.lt.f32.partialorder %v779, 0.5
        %vm783 = vmand %vm781, %vm782
        %v784 = vld [vmem:[%s388 + $0x8] sm:$0xff]
        %v785 = vld [vmem:[%s388 + $0x18] sm:$0xff]
        %v786 = vld [vmem:[%s388 + $0x28] sm:$0xff]
        %v787 = vld [vmem:[%s388 + $0x38] sm:$0xff]
        %vm788 = vcmp.eq.s32.totalorder %v773, 0
        %vm789 = vcmp.eq.s32.totalorder %v773, 1
        %vm790 = vcmp.eq.s32.totalorder %v773, 2
        %vm791 = vcmp.eq.s32.totalorder %v773, 3
        %v792 = vsel %vm780, 1, 0
        %vm793 = vcmp.eq.s32.totalorder %v792, 1
        %vm794 = vmand %vm788, %vm793
        %vm795 = vmand %vm789, %vm793
        %vm796 = vmand %vm790, %vm793
        %vm797 = vmand %vm791, %vm793
        %v798 = vsel %vm783, 1, 0
        %vm799 = vcmp.eq.s32.totalorder %v798, 1
        %vm800 = vmand %vm788, %vm799
        %vm801 = vmand %vm789, %vm799
        %vm802 = vmand %vm790, %vm799
        %vm803 = vmand %vm791, %vm799
        %v804 = vsub.f32 1.0, %v784
        %v805 = vsub.f32 1.0, %v785
        %v806 = vsub.f32 1.0, %v786
        %v807 = vsub.f32 1.0, %v787
        %v808 = vsel %vm794, %v784, %v804
        %v809 = vsel %vm795, %v785, %v805
        %v810 = vsel %vm796, %v786, %v806
        %v811 = vsel %vm797, %v787, %v807
        %v812 = vsel %vm794, 0.25, 0.75
        %v813 = vsel %vm795, 0.25, 0.75
        %v814 = vsel %vm796, 0.25, 0.75
        %v815 = vsel %vm797, 0.25, 0.75
        %v816 = vsub.f32 1.0, %v808
        %v817 = vsub.f32 1.0, %v809
        %v818 = vsub.f32 1.0, %v810
        %v819 = vsub.f32 1.0, %v811
        %v820 = vmul.f32 %v816, %v816
        %v821 = vmul.f32 %v817, %v817
        %v822 = vmul.f32 %v818, %v818
        %v823 = vmul.f32 %v819, %v819
        %v824 = vmul.f32 %v812, %v820
        %v825 = vmul.f32 %v813, %v821
        %v826 = vmul.f32 %v814, %v822
        %v827 = vmul.f32 %v815, %v823
        %v828 = vlog2.pop %v808
        %v829 = vmul.f32 %v828, 0.6931472
        %v830 = vlog2.pop %v809
        %v831 = vmul.f32 %v830, 0.6931472
        %v832 = vlog2.pop %v810
        %v833 = vmul.f32 %v832, 0.6931472
        %v834 = vlog2.pop %v811
        %v835 = vmul.f32 %v834, 0.6931472
        %v836 = vsub.f32 0.0, %v829
        %v837 = vsub.f32 0.0, %v831
        %v838 = vsub.f32 0.0, %v833
        %v839 = vsub.f32 0.0, %v835
        %v840 = vmin.f32 %v836, 100.0
        %v841 = vmin.f32 %v837, 100.0
        %v842 = vmin.f32 %v838, 100.0
        %v843 = vmin.f32 %v839, 100.0
        %v844 = vmul.f32 %v824, %v840
        %v845 = vmul.f32 %v825, %v841
        %v846 = vmul.f32 %v826, %v842
        %v847 = vmul.f32 %v827, %v843
        %v848 = vsel %vm800, 0.0, %v844
        %v849 = vsel %vm801, 0.0, %v845
        %v850 = vsel %vm802, 0.0, %v846
        %v851 = vsel %vm803, 0.0, %v847
        %v852 = vadd.f32 %v848, %v849
        %v853 = vadd.f32 %v852, %v850
        %v854 = vadd.f32 %v853, %v851
        %v855 = vadd.f32 %v646, %v854
        %v856 = vsub.f32 %v776, %v774
        %v857 = vsub.f32 %v777, %v775
        %v858 = vmul.f32 %v856, 0.5
        %v859 = vadd.f32 %v774, %v858
        %v860 = vmul.f32 %v857, 0.5
        %v861 = vadd.f32 %v775, %v860
        %v862 = vsub.f32 %v859, %v709
        %v863 = vmul.f32 %v862, %v711
        %v864 = vsub.f32 %v861, %v710
        %v865 = vmul.f32 %v864, %v712
        %v866 = vmul.f32 %v856, %v711
        %v867 = vsel %vm780, %v866, 1.0
        %v868 = vlog2.pop %v867
        %v869 = vmul.f32 %v868, 0.6931472
        %v870 = vmul.f32 %v857, %v712
        %v871 = vsel %vm780, %v870, 1.0
        %v872 = vlog2.pop %v871
        %v873 = vmul.f32 %v872, 0.6931472
        %v874 = vld [vmem:[%s400 + $0x8] sm:$0xff]
        %v875 = vld [vmem:[%s400 + $0x18] sm:$0xff]
        %v876 = vld [vmem:[%s400 + $0x28] sm:$0xff]
        %v877 = vld [vmem:[%s400 + $0x38] sm:$0xff]
        %v878 = vsub.f32 %v874, %v863
        %v879 = vand.u32 2147483647, %v878
        %vm880 = vcmp.lt.f32.partialorder %v879, 0.11111111
        %v881 = vmul.f32 %v878, 4.5
        %v882 = vmul.f32 %v881, %v878
        %v883 = vsub.f32 %v879, 0.055555556
        %v884 = vsel %vm880, %v882, %v883
        %v885 = vsub.f32 %v875, %v865
        %v886 = vand.u32 2147483647, %v885
        %vm887 = vcmp.lt.f32.partialorder %v886, 0.11111111
        %v888 = vmul.f32 %v885, 4.5
        %v889 = vmul.f32 %v888, %v885
        %v890 = vsub.f32 %v886, 0.055555556
        %v891 = vsel %vm887, %v889, %v890
        %v892 = vadd.f32 %v884, %v891
        %v893 = vsub.f32 %v876, %v869
        %v894 = vand.u32 2147483647, %v893
        %vm895 = vcmp.lt.f32.partialorder %v894, 0.11111111
        %v896 = vmul.f32 %v893, 4.5
        %v897 = vmul.f32 %v896, %v893
        %v898 = vsub.f32 %v894, 0.055555556
        %v899 = vsel %vm895, %v897, %v898
        %v900 = vadd.f32 %v892, %v899
        %v901 = vsub.f32 %v877, %v873
        %v902 = vand.u32 2147483647, %v901
        %vm903 = vcmp.lt.f32.partialorder %v902, 0.11111111
        %v904 = vmul.f32 %v901, 4.5
        %v905 = vmul.f32 %v904, %v901
        %v906 = vsub.f32 %v902, 0.055555556
        %v907 = vsel %vm903, %v905, %v906
        %v908 = vadd.f32 %v900, %v907
        %v909 = vsel %vm780, %v908, 0.0
        %v910 = vadd.f32 %v701, %v909
        %v911 = vcvt.s32.f32 %v792
        %v912 = vadd.f32 %v703, %v911
        %v913 = vld [vmem:[%s408] sm:$0xff]
        %v914 = vadd.f32 %v913, %v855
        %915 = vst [vmem:[%s408] sm:$0xff] %v914
        %s916 = scalar_lea.vmem %s408, 8
        %v917 = vld [vmem:[%s916] sm:$0xff]
        %v918 = vadd.f32 %v917, %v910
        %919 = vst [vmem:[%s916] sm:$0xff] %v918
        %s920 = scalar_lea.vmem %s408, 16
        %v921 = vld [vmem:[%s920] sm:$0xff]
        %v922 = vadd.f32 %v921, %v912
        %923 = vst [vmem:[%s920] sm:$0xff] %v922
        %s924 = sadd.s32 %s24, %s25
        %p925 = scmp.lt.s32.totalorder %s924, 1
        %s926 = scalar_select %p925, %s924, 1
        %s927 = smul.addr %s926, 3
        %s928 = smul.addr %s927, 8
        %s929 = scalar_lea.vmem %s6, %s928
        // Predicated region
        $region61: #{_focal_loss_impl.1} parent=43 // pred_check
          %p930 = pneg %p209
        $region62: #{_focal_loss_impl.1} parent=43 // pred_check_branch
          %932 = sbr.rel (%p930) target = $region64
        $region63: #{_focal_loss_impl.1} parent=43 // pred_region
          %s933 = sadd.s32 %s24, %s25
        $region64: #{_focal_loss_impl.1} parent=43 // pred_fallthru
          _
      $region44: #{_focal_loss_impl.1} parent=5 // pred_fallthru
        _
      %p934 = scmp.le.s32.totalorder 2, %s14
      // Predicated region
      $region65: #{_focal_loss_impl.1} parent=5 // pred_check
        %p935 = pneg %p934
      $region66: #{_focal_loss_impl.1} parent=5 // pred_check_branch
        %937 = sbr.rel (%p935) target = $region68
      $region67: #{_focal_loss_impl.1} parent=5 // pred_region
        %s938 = ssub.s32 %s14, 2
        // Predicated region
        $region69: #{_focal_loss_impl.1} parent=67 // pred_check
          %p939 = pneg %p215
        $region70: #{_focal_loss_impl.1} parent=67 // pred_check_branch
          %941 = sbr.rel (%p939) target = $region72
        $region71: #{_focal_loss_impl.1} parent=67 // pred_region
          %s942 = sadd.s32 %s27, %s28
          %p943 = scmp.lt.s32.totalorder %s942, 1
          %s944 = scalar_select %p943, %s942, 1
          %s945 = smul.addr %s944, 3
          %s946 = smul.addr %s945, 8
          %s947 = scalar_lea.vmem %s6, %s946
        $region72: #{_focal_loss_impl.1} parent=67 // pred_fallthru
          _
      $region68: #{_focal_loss_impl.1} parent=5 // pred_fallthru
        _
    $region6: #{_focal_loss_impl.1} parent=1 // loop_footer
      %s18 = sadd.s32 1, %s14
    $region7: #{_focal_loss_impl.1} parent=1 // loop_footer_branch
      %13 = sbr.rel target = $region3
    $region8: #{_focal_loss_impl.1} parent=1 // loop_exit
      _
    %948 = vsyncpa [#allocation3], 1
    %s949 = scalar_lea.sflag [#allocation3], 1
    %950 = vsyncpa %s949, 1
    %951 = vsyncpa [#allocation5], 1

</llo_original>
